<compile_context>
chip_gen: v5e
topology: v5e:2x2
jax: 0.10.0
libtpu: 0.0.40
codegen_flags: <defaults>
</compile_context>

<pallas_src>
import jax
import jax.numpy as jnp
from jax.experimental import pallas as pl
from jax.experimental.pallas import tpu as pltpu


def _round_up(n, m):
    return ((n + m - 1) // m) * m


def vae_fwd_kernel(x_ref, wenc_ref, benc_ref, wd_ref, bd_ref, eps_ref,
                   recon_ref, enc_ref):
    """Fused VAE forward for one batch tile.

    x_ref:    [TB, D]      bf16 flattened input tile
    wenc_ref: [D, 2*Lp]    bf16 fused encoder weights ([w_mu | w_lv], padded)
    benc_ref: [1, 2*Lp]    f32  fused encoder bias
    wd_ref:   [Lp, D]      bf16 decoder weights (padded rows are zero)
    bd_ref:   [1, D]       f32  decoder bias
    eps_ref:  [TB, Lp]     f32  N(0,1) noise (padded lanes are zero)
    recon_ref:[TB, D]      f32  reconstruction
    enc_ref:  [TB, 2*Lp]   f32  lane-dense [mu | log_var] slab
    """
    x = x_ref[...]

    # --- encode: single fused matmul for (mu, log_var), f32 accumulation ---
    enc = jnp.dot(x, wenc_ref[...], preferred_element_type=jnp.float32) + benc_ref[...]
    lp = enc.shape[-1] // 2
    mu = enc[:, :lp]
    logvar = enc[:, lp:]

    # --- reparameterize in f32 (VPU/EUP): z = mu + exp(0.5*logvar) * eps ---
    std = jnp.exp(0.5 * logvar)
    z = mu + std * eps_ref[...]

    # --- decode: bf16 MXU operands, f32 accumulation ---
    recon = jnp.dot(z.astype(wd_ref.dtype), wd_ref[...],
                    preferred_element_type=jnp.float32) + bd_ref[...]

    recon_ref[...] = recon
    enc_ref[...] = enc


def init_params(key, in_dim, latent_dim):
    """Deterministic synthetic f32 parameters (no checkpoint load)."""
    k1, k2, k3 = jax.random.split(key, 3)
    scale = 0.02
    return {
        "w_mu": jax.random.normal(k1, (in_dim, latent_dim), jnp.float32) * scale,
        "b_mu": jnp.zeros((1, latent_dim), jnp.float32),
        "w_lv": jax.random.normal(k2, (in_dim, latent_dim), jnp.float32) * scale,
        "b_lv": jnp.zeros((1, latent_dim), jnp.float32),
        "w_dec": jax.random.normal(k3, (latent_dim, in_dim), jnp.float32) * scale,
        "b_dec": jnp.zeros((1, in_dim), jnp.float32),
    }


def _prepare_fused_params(params):
    """Layout plumbing (wrapper side): fuse + pad + cast encoder/decoder weights."""
    D, L = params["w_mu"].shape
    Lp = _round_up(L, 128)

    # Fused, lane-padded encoder weight [D, 2*Lp]: [w_mu | 0 | w_lv | 0]
    w_enc = jnp.zeros((D, 2 * Lp), jnp.float32)
    w_enc = w_enc.at[:, :L].set(params["w_mu"])
    w_enc = w_enc.at[:, Lp:Lp + L].set(params["w_lv"])
    b_enc = jnp.zeros((1, 2 * Lp), jnp.float32)
    b_enc = b_enc.at[:, :L].set(params["b_mu"])
    b_enc = b_enc.at[:, Lp:Lp + L].set(params["b_lv"])

    # Padded decoder weight [Lp, D] (padded rows zero -> padded z lanes inert).
    w_dec = jnp.zeros((Lp, D), jnp.float32).at[:L, :].set(params["w_dec"])
    b_dec = params["b_dec"].astype(jnp.float32)

    return {
        "w_enc": w_enc.astype(jnp.bfloat16),
        "b_enc": b_enc,                       # keep biases f32 (added post-accum)
        "w_dec": w_dec.astype(jnp.bfloat16),
        "b_dec": b_dec,
        "L": L,
        "Lp": Lp,
    }


def vae_forward(x_nchw, params, eps, *, tb=128):
    """Returns [recon (NCHW), input (NCHW), mu, log_var] — the BaseVAE contract."""
    B, C, H, W = x_nchw.shape
    D = C * H * W
    fused = _prepare_fused_params(params)
    L, Lp = fused["L"], fused["Lp"]

    # Batch tile: multiple of 8 sublanes, at most the (padded) batch.
    tb = min(tb, _round_up(B, 8))
    Bp = _round_up(B, tb)
    grid = (Bp // tb,)

    # Pad batch and latent dims (zeros are inert by construction above).
    x_flat = jnp.zeros((Bp, D), jnp.bfloat16).at[:B].set(
        x_nchw.reshape(B, D).astype(jnp.bfloat16))
    eps_p = jnp.zeros((Bp, Lp), jnp.float32).at[:B, :L].set(eps.astype(jnp.float32))

    recon_p, enc_slab = pl.pallas_call(
        vae_fwd_kernel,
        out_shape=(
            jax.ShapeDtypeStruct((Bp, D), jnp.float32),
            jax.ShapeDtypeStruct((Bp, 2 * Lp), jnp.float32),
        ),
        grid_spec=pltpu.PrefetchScalarGridSpec(
            num_scalar_prefetch=0,
            grid=grid,
            in_specs=[
                pl.BlockSpec((tb, D), lambda i: (i, 0)),          # x tile
                pl.BlockSpec((D, 2 * Lp), lambda i: (0, 0)),      # fused enc weight
                pl.BlockSpec((1, 2 * Lp), lambda i: (0, 0)),      # fused enc bias
                pl.BlockSpec((Lp, D), lambda i: (0, 0)),          # dec weight
                pl.BlockSpec((1, D), lambda i: (0, 0)),           # dec bias
                pl.BlockSpec((tb, Lp), lambda i: (i, 0)),         # eps tile
            ],
            out_specs=(
                pl.BlockSpec((tb, D), lambda i: (i, 0)),          # recon tile
                pl.BlockSpec((tb, 2 * Lp), lambda i: (i, 0)),     # [mu|logvar] slab
            ),
        ),
        compiler_params=pltpu.CompilerParams(
            dimension_semantics=("parallel",),
            vmem_limit_bytes=48 * 1024 * 1024,
        ),
    )(x_flat, fused["w_enc"], fused["b_enc"], fused["w_dec"], fused["b_dec"], eps_p)

    recon = recon_p[:B].reshape(B, C, H, W)
    mu = enc_slab[:B, :L]
    logvar = enc_slab[:B, Lp:Lp + L]
    return [recon, x_nchw, mu, logvar]


if __name__ == "__main__":
    key = jax.random.PRNGKey(0)
    k_x, k_p, k_eps = jax.random.split(key, 3)

    B, C, H, W = 2, 4, 16, 16
    latent_dim = 32
    D = C * H * W

    x = jax.random.normal(k_x, (B, C, H, W), jnp.float32)
    params = init_params(k_p, D, latent_dim)
    eps = jax.random.normal(k_eps, (B, latent_dim), jnp.float32)

    recon, inp, mu, logvar = vae_forward(x, params, eps)
    jax.block_until_ready((recon, inp, mu, logvar))

    assert recon.shape == (B, C, H, W)
    assert inp.shape == (B, C, H, W)
    assert mu.shape == (B, latent_dim)
    assert logvar.shape == (B, latent_dim)

    # Pure-JAX reference using the SAME bf16-cast operands + f32 accumulation.
    x_bf = x.reshape(B, D).astype(jnp.bfloat16)
    w_mu_bf = params["w_mu"].astype(jnp.bfloat16)
    w_lv_bf = params["w_lv"].astype(jnp.bfloat16)
    w_dec_bf = params["w_dec"].astype(jnp.bfloat16)
    mu_ref = jnp.dot(x_bf, w_mu_bf, preferred_element_type=jnp.float32) + params["b_mu"]
    lv_ref = jnp.dot(x_bf, w_lv_bf, preferred_element_type=jnp.float32) + params["b_lv"]
    z_ref = mu_ref + jnp.exp(0.5 * lv_ref) * eps
    rec_ref = (jnp.dot(z_ref.astype(jnp.bfloat16), w_dec_bf,
                       preferred_element_type=jnp.float32)
               + params["b_dec"]).reshape(B, C, H, W)

    assert jnp.allclose(mu, mu_ref, atol=1e-2, rtol=1e-2)
    assert jnp.allclose(logvar, lv_ref, atol=1e-2, rtol=1e-2)
    assert jnp.allclose(recon, rec_ref, atol=1e-2, rtol=1e-2)

    print("KERNEL_OK")
</pallas_src>

<mosaic_0001>
module attributes {stable_mosaic.version = 11 : i64} {
  func.func @vae_fwd_kernel(%arg0: i32, %arg1: memref<8x1024xbf16, #tpu.memory_space<vmem>>, %arg2: memref<1024x256xbf16, #tpu.memory_space<vmem>>, %arg3: memref<1x256xf32, #tpu.memory_space<vmem>>, %arg4: memref<128x1024xbf16, #tpu.memory_space<vmem>>, %arg5: memref<1x1024xf32, #tpu.memory_space<vmem>>, %arg6: memref<8x128xf32, #tpu.memory_space<vmem>>, %arg7: memref<8x1024xf32, #tpu.memory_space<vmem>>, %arg8: memref<8x256xf32, #tpu.memory_space<vmem>>) attributes {dimension_semantics = [#tpu.dimension_semantics<parallel>], iteration_bounds = array<i64: 1>, scalar_prefetch = 0 : i64, scratch_operands = 0 : i64, tpu.core_type = #tpu.core_type<tc>, window_params = [{transform_indices = @transform_0, window_bounds = array<i64: 8, 1024>}, {pipeline_mode = #tpu.pipeline_mode<synchronous>, transform_indices = @transform_1, window_bounds = array<i64: 1024, 256>}, {pipeline_mode = #tpu.pipeline_mode<synchronous>, transform_indices = @transform_2, window_bounds = array<i64: 1, 256>}, {pipeline_mode = #tpu.pipeline_mode<synchronous>, transform_indices = @transform_3, window_bounds = array<i64: 128, 1024>}, {pipeline_mode = #tpu.pipeline_mode<synchronous>, transform_indices = @transform_4, window_bounds = array<i64: 1, 1024>}, {transform_indices = @transform_5, window_bounds = array<i64: 8, 128>}, {transform_indices = @transform_6, window_bounds = array<i64: 8, 1024>}, {transform_indices = @transform_7, window_bounds = array<i64: 8, 256>}]} {
    %c0 = arith.constant 0 : index
    %c0_0 = arith.constant 0 : index
    %0 = vector.load %arg1[%c0, %c0_0] : memref<8x1024xbf16, #tpu.memory_space<vmem>>, vector<8x1024xbf16>
    %c0_1 = arith.constant 0 : index
    %c0_2 = arith.constant 0 : index
    %1 = vector.load %arg2[%c0_1, %c0_2] : memref<1024x256xbf16, #tpu.memory_space<vmem>>, vector<1024x256xbf16>
    %cst = arith.constant dense<0.000000e+00> : vector<8x256xf32>
    %2 = tpu.matmul %0, %1, %cst {dimension_numbers = #tpu.dot_dimension_numbers<[1], [0], [0], [1], [0, 0, 1, 1], [], []>} : vector<8x1024xbf16>, vector<1024x256xbf16>, vector<8x256xf32> -> vector<8x256xf32>
    %c0_3 = arith.constant 0 : index
    %c0_4 = arith.constant 0 : index
    %3 = vector.load %arg3[%c0_3, %c0_4] : memref<1x256xf32, #tpu.memory_space<vmem>>, vector<1x256xf32>
    %4 = vector.broadcast %3 : vector<1x256xf32> to vector<8x256xf32>
    %5 = arith.addf %2, %4 : vector<8x256xf32>
    %6 = vector.extract_strided_slice %5 {offsets = [0, 0], sizes = [8, 128], strides = [1, 1]} : vector<8x256xf32> to vector<8x128xf32>
    %7 = vector.extract_strided_slice %5 {offsets = [0, 128], sizes = [8, 128], strides = [1, 1]} : vector<8x256xf32> to vector<8x128xf32>
    %cst_5 = arith.constant 5.000000e-01 : f32
    %8 = vector.broadcast %cst_5 : f32 to vector<8x128xf32>
    %9 = arith.mulf %8, %7 : vector<8x128xf32>
    %10 = math.exp %9 : vector<8x128xf32>
    %c0_6 = arith.constant 0 : index
    %c0_7 = arith.constant 0 : index
    %11 = vector.load %arg6[%c0_6, %c0_7] : memref<8x128xf32, #tpu.memory_space<vmem>>, vector<8x128xf32>
    %12 = arith.mulf %10, %11 : vector<8x128xf32>
    %13 = arith.addf %6, %12 : vector<8x128xf32>
    %14 = arith.truncf %13 : vector<8x128xf32> to vector<8x128xbf16>
    %c0_8 = arith.constant 0 : index
    %c0_9 = arith.constant 0 : index
    %15 = vector.load %arg4[%c0_8, %c0_9] : memref<128x1024xbf16, #tpu.memory_space<vmem>>, vector<128x1024xbf16>
    %cst_10 = arith.constant dense<0.000000e+00> : vector<8x1024xf32>
    %16 = tpu.matmul %14, %15, %cst_10 {dimension_numbers = #tpu.dot_dimension_numbers<[1], [0], [0], [1], [0, 0, 1, 1], [], []>} : vector<8x128xbf16>, vector<128x1024xbf16>, vector<8x1024xf32> -> vector<8x1024xf32>
    %c0_11 = arith.constant 0 : index
    %c0_12 = arith.constant 0 : index
    %17 = vector.load %arg5[%c0_11, %c0_12] : memref<1x1024xf32, #tpu.memory_space<vmem>>, vector<1x1024xf32>
    %18 = vector.broadcast %17 : vector<1x1024xf32> to vector<8x1024xf32>
    %19 = arith.addf %16, %18 : vector<8x1024xf32>
    %c0_13 = arith.constant 0 : index
    %c0_14 = arith.constant 0 : index
    %20 = vector.load %arg7[%c0_13, %c0_14] : memref<8x1024xf32, #tpu.memory_space<vmem>>, vector<8x1024xf32>
    tpu.vector_store %arg7[%c0_13, %c0_14], %19 {strides = array<i32>} : memref<8x1024xf32, #tpu.memory_space<vmem>>, vector<8x1024xf32>,
    %c0_15 = arith.constant 0 : index
    %c0_16 = arith.constant 0 : index
    %21 = vector.load %arg8[%c0_15, %c0_16] : memref<8x256xf32, #tpu.memory_space<vmem>>, vector<8x256xf32>
    tpu.vector_store %arg8[%c0_15, %c0_16], %5 {strides = array<i32>} : memref<8x256xf32, #tpu.memory_space<vmem>>, vector<8x256xf32>,
    return
  }
  func.func @transform_0(%arg0: i32) -> (i32, i32) {
    %c0_i32 = arith.constant 0 : i32
    %c0_i32_0 = arith.constant 0 : i32
    return %arg0, %c0_i32 : i32, i32
  }
  func.func @transform_1(%arg0: i32) -> (i32, i32) {
    %c0_i32 = arith.constant 0 : i32
    %c0_i32_0 = arith.constant 0 : i32
    %c0_i32_1 = arith.constant 0 : i32
    return %c0_i32, %c0_i32_0 : i32, i32
  }
  func.func @transform_2(%arg0: i32) -> (i32, i32) {
    %c0_i32 = arith.constant 0 : i32
    %c0_i32_0 = arith.constant 0 : i32
    %c0_i32_1 = arith.constant 0 : i32
    return %c0_i32, %c0_i32_0 : i32, i32
  }
  func.func @transform_3(%arg0: i32) -> (i32, i32) {
    %c0_i32 = arith.constant 0 : i32
    %c0_i32_0 = arith.constant 0 : i32
    %c0_i32_1 = arith.constant 0 : i32
    return %c0_i32, %c0_i32_0 : i32, i32
  }
  func.func @transform_4(%arg0: i32) -> (i32, i32) {
    %c0_i32 = arith.constant 0 : i32
    %c0_i32_0 = arith.constant 0 : i32
    %c0_i32_1 = arith.constant 0 : i32
    return %c0_i32, %c0_i32_0 : i32, i32
  }
  func.func @transform_5(%arg0: i32) -> (i32, i32) {
    %c0_i32 = arith.constant 0 : i32
    %c0_i32_0 = arith.constant 0 : i32
    return %arg0, %c0_i32 : i32, i32
  }
  func.func @transform_6(%arg0: i32) -> (i32, i32) {
    %c0_i32 = arith.constant 0 : i32
    %c0_i32_0 = arith.constant 0 : i32
    return %arg0, %c0_i32 : i32, i32
  }
  func.func @transform_7(%arg0: i32) -> (i32, i32) {
    %c0_i32 = arith.constant 0 : i32
    %c0_i32_0 = arith.constant 0 : i32
    return %arg0, %c0_i32 : i32, i32
  }
}

</mosaic_0001>

<llo_original>
// kernel: tpu_custom_call.1
$region0: #{tpu_custom_call.1}
  #allocation0 [shape = 'u32[]', space=smem, size = 0x4, offset = 0x4, fixed_abs, tag = 'smem constant byte address 0x4 - core index']
  #allocation1 [shape = 'u32[72,128]{1,0:T(1,128)}', space=vmem, size = 0x9000, scoped, tag = 'internal scratch']
  %s0 = inlined_call_operand.hbm [shape: bf16[8,1024], index: 0, kind: input, shape index: {}]
  %s1 = inlined_call_operand.hbm [shape: bf16[1024,256], index: 1, kind: input, shape index: {}]
  %s2 = inlined_call_operand.hbm [shape: f32[1,256], index: 2, kind: input, shape index: {}]
  %s3 = inlined_call_operand.hbm [shape: bf16[128,1024], index: 3, kind: input, shape index: {}]
  %s4 = inlined_call_operand.hbm [shape: f32[1,1024], index: 4, kind: input, shape index: {}]
  %s5 = inlined_call_operand.hbm [shape: f32[8,128], index: 5, kind: input, shape index: {}]
  %s6 = inlined_call_operand.hbm [shape: f32[8,1024], index: 6, kind: output, shape index: {0}]
  %s7 = inlined_call_operand.hbm [shape: f32[8,256], index: 7, kind: output, shape index: {1}]
  %8 = xla_tuple %s6, %s7
  %s9 = sld [smem:[#allocation0]]
  $region66: #{tpu_custom_call.1} parent=0
    _
  %s11 = ssub.s32 1, %s9
  %s12 = scalar_select 0, %s11, %s9
  $region1: #{tpu_custom_call.1} parent=0
    #allocation2 [shape = 'u8[16384]{0}', space=vmem, size = 0x4000, scoped, tag = 'input window, operand 0, single buffered']
    #allocation3 [shape = 's32[1]{0}', space=sflag, size = 0x4, scoped, tag = 'scoped memory for tpu_custom_call.1']
    #allocation4 [shape = 's32[1]{0}', space=sflag, size = 0x4, scoped, tag = 'scoped memory for tpu_custom_call.1']
    #allocation5 [shape = 'u8[524288]{0}', space=vmem, size = 0x80000, scoped, tag = 'input window, operand 1, single buffered']
    #allocation6 [shape = 's32[1]{0}', space=sflag, size = 0x4, scoped, tag = 'scoped memory for tpu_custom_call.1']
    #allocation7 [shape = 'u8[1024]{0}', space=vmem, size = 0x400, scoped, tag = 'input window, operand 2, single buffered']
    #allocation8 [shape = 'u8[262144]{0}', space=vmem, size = 0x40000, scoped, tag = 'input window, operand 3, single buffered']
    #allocation9 [shape = 's32[1]{0}', space=sflag, size = 0x4, scoped, tag = 'scoped memory for tpu_custom_call.1']
    #allocation10 [shape = 'u8[4096]{0}', space=vmem, size = 0x1000, scoped, tag = 'input window, operand 4, single buffered']
    #allocation11 [shape = 'u8[4096]{0}', space=vmem, size = 0x1000, scoped, tag = 'input window, operand 5, single buffered']
    #allocation12 [shape = 's32[1]{0}', space=sflag, size = 0x4, scoped, tag = 'scoped memory for tpu_custom_call.1']
    #allocation13 [shape = 'u8[32768]{0}', space=vmem, size = 0x8000, scoped, tag = 'output window, operand 0, single buffered']
    #allocation14 [shape = 'u8[8192]{0}', space=vmem, size = 0x2000, scoped, tag = 'output window, operand 1, single buffered']
    #allocation15 [shape = 's32[1]{0}', space=sflag, size = 0x4, scoped, tag = 'scoped memory for tpu_custom_call.1']
    %13 = vsyncpa [#allocation3], 0
    %14 = vsyncpa [#allocation6], 0
    %15 = vsyncpa [#allocation9], 0
    %16 = vsyncpa [#allocation12], 0
    %17 = vsyncpa [#allocation4], 0
    %18 = vsyncpa [#allocation15], 0
    // Predicated region
    $region2: #{tpu_custom_call.1} parent=1 // pred_check
      _
    $region3: #{tpu_custom_call.1} parent=1 // pred_check_branch
      %20 = sbr.rel (0) target = $region5
    $region4: #{tpu_custom_call.1} parent=1 // pred_region
      %22 = vsyncadd [#allocation3], 0
      %s24 = sshll.u32 %s0, 4
      %s25 = int_to_ptr.hbm [resolvable:$true] %s24
      %s26 = sshll.u32 [#allocation2], 4
      %s27 = int_to_ptr.vmem [resolvable:$true] %s26
      %29 = dma.hbm_to_vmem [thread:$0]  %s25, 512, %s27, [#allocation3]
    $region5: #{tpu_custom_call.1} parent=1 // pred_fallthru
      _
    // Predicated region
    $region6: #{tpu_custom_call.1} parent=1 // pred_check
      _
    $region7: #{tpu_custom_call.1} parent=1 // pred_check_branch
      %31 = sbr.rel (0) target = $region9
    $region8: #{tpu_custom_call.1} parent=1 // pred_region
      %33 = vsyncadd [#allocation6], 0
      %s34 = sshll.u32 %s1, 4
      %s35 = int_to_ptr.hbm [resolvable:$true] %s34
      %s36 = sshll.u32 [#allocation5], 4
      %s37 = int_to_ptr.vmem [resolvable:$true] %s36
      %42 = dma.hbm_to_vmem [thread:$0]  %s35, 16384, %s37, [#allocation6], 128, 128, 8
    $region9: #{tpu_custom_call.1} parent=1 // pred_fallthru
      _
    // Predicated region
    $region10: #{tpu_custom_call.1} parent=1 // pred_check
      _
    $region11: #{tpu_custom_call.1} parent=1 // pred_check_branch
      %44 = sbr.rel (0) target = $region13
    $region12: #{tpu_custom_call.1} parent=1 // pred_region
      %46 = vsyncadd [#allocation6], 0
      %s48 = sshll.u32 %s2, 4
      %s49 = int_to_ptr.hbm [resolvable:$true] %s48
      %s50 = sshll.u32 [#allocation7], 4
      %s51 = int_to_ptr.vmem [resolvable:$true] %s50
      %53 = dma.hbm_to_vmem [thread:$0]  %s49, 32, %s51, [#allocation6]
    $region13: #{tpu_custom_call.1} parent=1 // pred_fallthru
      _
    // Predicated region
    $region14: #{tpu_custom_call.1} parent=1 // pred_check
      _
    $region15: #{tpu_custom_call.1} parent=1 // pred_check_branch
      %55 = sbr.rel (0) target = $region17
    $region16: #{tpu_custom_call.1} parent=1 // pred_region
      %57 = vsyncadd [#allocation9], 0
      %s58 = sshll.u32 %s3, 4
      %s59 = int_to_ptr.hbm [resolvable:$true] %s58
      %s60 = sshll.u32 [#allocation8], 4
      %s61 = int_to_ptr.vmem [resolvable:$true] %s60
      %66 = dma.hbm_to_vmem [thread:$0]  %s59, 8192, %s61, [#allocation9], 512, 512, 32
    $region17: #{tpu_custom_call.1} parent=1 // pred_fallthru
      _
    // Predicated region
    $region18: #{tpu_custom_call.1} parent=1 // pred_check
      _
    $region19: #{tpu_custom_call.1} parent=1 // pred_check_branch
      %68 = sbr.rel (0) target = $region21
    $region20: #{tpu_custom_call.1} parent=1 // pred_region
      %70 = vsyncadd [#allocation9], 0
      %s72 = sshll.u32 %s4, 4
      %s73 = int_to_ptr.hbm [resolvable:$true] %s72
      %s74 = sshll.u32 [#allocation10], 4
      %s75 = int_to_ptr.vmem [resolvable:$true] %s74
      %77 = dma.hbm_to_vmem [thread:$0]  %s73, 128, %s75, [#allocation9]
    $region21: #{tpu_custom_call.1} parent=1 // pred_fallthru
      _
    // Predicated region
    $region22: #{tpu_custom_call.1} parent=1 // pred_check
      _
    $region23: #{tpu_custom_call.1} parent=1 // pred_check_branch
      %79 = sbr.rel (0) target = $region25
    $region24: #{tpu_custom_call.1} parent=1 // pred_region
      %81 = vsyncadd [#allocation12], 0
      %s83 = sshll.u32 %s5, 4
      %s84 = int_to_ptr.hbm [resolvable:$true] %s83
      %s85 = sshll.u32 [#allocation11], 4
      %s86 = int_to_ptr.vmem [resolvable:$true] %s85
      %88 = dma.hbm_to_vmem [thread:$0]  %s84, 128, %s86, [#allocation12]
    $region25: #{tpu_custom_call.1} parent=1 // pred_fallthru
      _
    // Predicated region
    $region26: #{tpu_custom_call.1} parent=1 // pred_check
      _
    $region27: #{tpu_custom_call.1} parent=1 // pred_check_branch
      %90 = sbr.rel (0) target = $region29
    $region28: #{tpu_custom_call.1} parent=1 // pred_region
      %92 = dma.done [#allocation3], 512
    $region29: #{tpu_custom_call.1} parent=1 // pred_fallthru
      _
    // Predicated region
    $region30: #{tpu_custom_call.1} parent=1 // pred_check
      _
    $region31: #{tpu_custom_call.1} parent=1 // pred_check_branch
      %94 = sbr.rel (0) target = $region33
    $region32: #{tpu_custom_call.1} parent=1 // pred_region
      %96 = dma.done [#allocation6], 16384
    $region33: #{tpu_custom_call.1} parent=1 // pred_fallthru
      _
    // Predicated region
    $region34: #{tpu_custom_call.1} parent=1 // pred_check
      _
    $region35: #{tpu_custom_call.1} parent=1 // pred_check_branch
      %98 = sbr.rel (0) target = $region37
    $region36: #{tpu_custom_call.1} parent=1 // pred_region
      %100 = dma.done [#allocation6], 32
    $region37: #{tpu_custom_call.1} parent=1 // pred_fallthru
      _
    // Predicated region
    $region38: #{tpu_custom_call.1} parent=1 // pred_check
      _
    $region39: #{tpu_custom_call.1} parent=1 // pred_check_branch
      %102 = sbr.rel (0) target = $region41
    $region40: #{tpu_custom_call.1} parent=1 // pred_region
      %104 = dma.done [#allocation9], 8192
    $region41: #{tpu_custom_call.1} parent=1 // pred_fallthru
      _
    // Predicated region
    $region42: #{tpu_custom_call.1} parent=1 // pred_check
      _
    $region43: #{tpu_custom_call.1} parent=1 // pred_check_branch
      %106 = sbr.rel (0) target = $region45
    $region44: #{tpu_custom_call.1} parent=1 // pred_region
      %108 = dma.done [#allocation9], 128
    $region45: #{tpu_custom_call.1} parent=1 // pred_fallthru
      _
    // Predicated region
    $region46: #{tpu_custom_call.1} parent=1 // pred_check
      _
    $region47: #{tpu_custom_call.1} parent=1 // pred_check_branch
      %110 = sbr.rel (0) target = $region49
    $region48: #{tpu_custom_call.1} parent=1 // pred_region
      %112 = dma.done [#allocation12], 128
    $region49: #{tpu_custom_call.1} parent=1 // pred_fallthru
      _
    %v113 = vld [vmem:[#allocation2] sm:$0xff]
    %v114 = vld [vmem:[#allocation2 + $0x8] sm:$0xff]
    %v115 = vld [vmem:[#allocation2 + $0x10] sm:$0xff]
    %v116 = vld [vmem:[#allocation2 + $0x18] sm:$0xff]
    %v117 = vld [vmem:[#allocation5] sm:$0xff]
    %v118 = vld [vmem:[#allocation5 + $0x8] sm:$0xff]
    %v119 = vld [vmem:[#allocation5 + $0x10] sm:$0xff]
    %v120 = vld [vmem:[#allocation5 + $0x18] sm:$0xff]
    %v121 = vld [vmem:[#allocation5 + $0x20] sm:$0xff]
    %v122 = vld [vmem:[#allocation5 + $0x28] sm:$0xff]
    %v123 = vld [vmem:[#allocation5 + $0x30] sm:$0xff]
    %v124 = vld [vmem:[#allocation5 + $0x38] sm:$0xff]
    %v125 = vld [vmem:[#allocation5 + $0x40] sm:$0xff]
    %v126 = vld [vmem:[#allocation5 + $0x48] sm:$0xff]
    %v127 = vld [vmem:[#allocation5 + $0x50] sm:$0xff]
    %v128 = vld [vmem:[#allocation5 + $0x58] sm:$0xff]
    %v129 = vld [vmem:[#allocation5 + $0x60] sm:$0xff]
    %v130 = vld [vmem:[#allocation5 + $0x68] sm:$0xff]
    %v131 = vld [vmem:[#allocation5 + $0x70] sm:$0xff]
    %v132 = vld [vmem:[#allocation5 + $0x78] sm:$0xff]
    %v133 = vld [vmem:[#allocation5 + $0x80] sm:$0xff]
    %v134 = vld [vmem:[#allocation5 + $0x88] sm:$0xff]
    %v135 = vld [vmem:[#allocation5 + $0x90] sm:$0xff]
    %v136 = vld [vmem:[#allocation5 + $0x98] sm:$0xff]
    %v137 = vld [vmem:[#allocation5 + $0xa0] sm:$0xff]
    %v138 = vld [vmem:[#allocation5 + $0xa8] sm:$0xff]
    %v139 = vld [vmem:[#allocation5 + $0xb0] sm:$0xff]
    %v140 = vld [vmem:[#allocation5 + $0xb8] sm:$0xff]
    %v141 = vld [vmem:[#allocation5 + $0xc0] sm:$0xff]
    %v142 = vld [vmem:[#allocation5 + $0xc8] sm:$0xff]
    %v143 = vld [vmem:[#allocation5 + $0xd0] sm:$0xff]
    %v144 = vld [vmem:[#allocation5 + $0xd8] sm:$0xff]
    %v145 = vld [vmem:[#allocation5 + $0xe0] sm:$0xff]
    %v146 = vld [vmem:[#allocation5 + $0xe8] sm:$0xff]
    %v147 = vld [vmem:[#allocation5 + $0xf0] sm:$0xff]
    %v148 = vld [vmem:[#allocation5 + $0xf8] sm:$0xff]
    %v149 = vld [vmem:[#allocation5 + $0x100] sm:$0xff]
    %v150 = vld [vmem:[#allocation5 + $0x108] sm:$0xff]
    %v151 = vld [vmem:[#allocation5 + $0x110] sm:$0xff]
    %v152 = vld [vmem:[#allocation5 + $0x118] sm:$0xff]
    %v153 = vld [vmem:[#allocation5 + $0x120] sm:$0xff]
    %v154 = vld [vmem:[#allocation5 + $0x128] sm:$0xff]
    %v155 = vld [vmem:[#allocation5 + $0x130] sm:$0xff]
    %v156 = vld [vmem:[#allocation5 + $0x138] sm:$0xff]
    %v157 = vld [vmem:[#allocation5 + $0x140] sm:$0xff]
    %v158 = vld [vmem:[#allocation5 + $0x148] sm:$0xff]
    %v159 = vld [vmem:[#allocation5 + $0x150] sm:$0xff]
    %v160 = vld [vmem:[#allocation5 + $0x158] sm:$0xff]
    %v161 = vld [vmem:[#allocation5 + $0x160] sm:$0xff]
    %v162 = vld [vmem:[#allocation5 + $0x168] sm:$0xff]
    %v163 = vld [vmem:[#allocation5 + $0x170] sm:$0xff]
    %v164 = vld [vmem:[#allocation5 + $0x178] sm:$0xff]
    %v165 = vld [vmem:[#allocation5 + $0x180] sm:$0xff]
    %v166 = vld [vmem:[#allocation5 + $0x188] sm:$0xff]
    %v167 = vld [vmem:[#allocation5 + $0x190] sm:$0xff]
    %v168 = vld [vmem:[#allocation5 + $0x198] sm:$0xff]
    %v169 = vld [vmem:[#allocation5 + $0x1a0] sm:$0xff]
    %v170 = vld [vmem:[#allocation5 + $0x1a8] sm:$0xff]
    %v171 = vld [vmem:[#allocation5 + $0x1b0] sm:$0xff]
    %v172 = vld [vmem:[#allocation5 + $0x1b8] sm:$0xff]
    %v173 = vld [vmem:[#allocation5 + $0x1c0] sm:$0xff]
    %v174 = vld [vmem:[#allocation5 + $0x1c8] sm:$0xff]
    %v175 = vld [vmem:[#allocation5 + $0x1d0] sm:$0xff]
    %v176 = vld [vmem:[#allocation5 + $0x1d8] sm:$0xff]
    %v177 = vld [vmem:[#allocation5 + $0x1e0] sm:$0xff]
    %v178 = vld [vmem:[#allocation5 + $0x1e8] sm:$0xff]
    %v179 = vld [vmem:[#allocation5 + $0x1f0] sm:$0xff]
    %v180 = vld [vmem:[#allocation5 + $0x1f8] sm:$0xff]
    %v181 = vld [vmem:[#allocation5 + $0x200] sm:$0xff]
    %v182 = vld [vmem:[#allocation5 + $0x208] sm:$0xff]
    %v183 = vld [vmem:[#allocation5 + $0x210] sm:$0xff]
    %v184 = vld [vmem:[#allocation5 + $0x218] sm:$0xff]
    %v185 = vld [vmem:[#allocation5 + $0x220] sm:$0xff]
    %v186 = vld [vmem:[#allocation5 + $0x228] sm:$0xff]
    %v187 = vld [vmem:[#allocation5 + $0x230] sm:$0xff]
    %v188 = vld [vmem:[#allocation5 + $0x238] sm:$0xff]
    %v189 = vld [vmem:[#allocation5 + $0x240] sm:$0xff]
    %v190 = vld [vmem:[#allocation5 + $0x248] sm:$0xff]
    %v191 = vld [vmem:[#allocation5 + $0x250] sm:$0xff]
    %v192 = vld [vmem:[#allocation5 + $0x258] sm:$0xff]
    %v193 = vld [vmem:[#allocation5 + $0x260] sm:$0xff]
    %v194 = vld [vmem:[#allocation5 + $0x268] sm:$0xff]
    %v195 = vld [vmem:[#allocation5 + $0x270] sm:$0xff]
    %v196 = vld [vmem:[#allocation5 + $0x278] sm:$0xff]
    %v197 = vld [vmem:[#allocation5 + $0x280] sm:$0xff]
    %v198 = vld [vmem:[#allocation5 + $0x288] sm:$0xff]
    %v199 = vld [vmem:[#allocation5 + $0x290] sm:$0xff]
    %v200 = vld [vmem:[#allocation5 + $0x298] sm:$0xff]
    %v201 = vld [vmem:[#allocation5 + $0x2a0] sm:$0xff]
    %v202 = vld [vmem:[#allocation5 + $0x2a8] sm:$0xff]
    %v203 = vld [vmem:[#allocation5 + $0x2b0] sm:$0xff]
    %v204 = vld [vmem:[#allocation5 + $0x2b8] sm:$0xff]
    %v205 = vld [vmem:[#allocation5 + $0x2c0] sm:$0xff]
    %v206 = vld [vmem:[#allocation5 + $0x2c8] sm:$0xff]
    %v207 = vld [vmem:[#allocation5 + $0x2d0] sm:$0xff]
    %v208 = vld [vmem:[#allocation5 + $0x2d8] sm:$0xff]
    %v209 = vld [vmem:[#allocation5 + $0x2e0] sm:$0xff]
    %v210 = vld [vmem:[#allocation5 + $0x2e8] sm:$0xff]
    %v211 = vld [vmem:[#allocation5 + $0x2f0] sm:$0xff]
    %v212 = vld [vmem:[#allocation5 + $0x2f8] sm:$0xff]
    %v213 = vld [vmem:[#allocation5 + $0x300] sm:$0xff]
    %v214 = vld [vmem:[#allocation5 + $0x308] sm:$0xff]
    %v215 = vld [vmem:[#allocation5 + $0x310] sm:$0xff]
    %v216 = vld [vmem:[#allocation5 + $0x318] sm:$0xff]
    %v217 = vld [vmem:[#allocation5 + $0x320] sm:$0xff]
    %v218 = vld [vmem:[#allocation5 + $0x328] sm:$0xff]
    %v219 = vld [vmem:[#allocation5 + $0x330] sm:$0xff]
    %v220 = vld [vmem:[#allocation5 + $0x338] sm:$0xff]
    %v221 = vld [vmem:[#allocation5 + $0x340] sm:$0xff]
    %v222 = vld [vmem:[#allocation5 + $0x348] sm:$0xff]
    %v223 = vld [vmem:[#allocation5 + $0x350] sm:$0xff]
    %v224 = vld [vmem:[#allocation5 + $0x358] sm:$0xff]
    %v225 = vld [vmem:[#allocation5 + $0x360] sm:$0xff]
    %v226 = vld [vmem:[#allocation5 + $0x368] sm:$0xff]
    %v227 = vld [vmem:[#allocation5 + $0x370] sm:$0xff]
    %v228 = vld [vmem:[#allocation5 + $0x378] sm:$0xff]
    %v229 = vld [vmem:[#allocation5 + $0x380] sm:$0xff]
    %v230 = vld [vmem:[#allocation5 + $0x388] sm:$0xff]
    %v231 = vld [vmem:[#allocation5 + $0x390] sm:$0xff]
    %v232 = vld [vmem:[#allocation5 + $0x398] sm:$0xff]
    %v233 = vld [vmem:[#allocation5 + $0x3a0] sm:$0xff]
    %v234 = vld [vmem:[#allocation5 + $0x3a8] sm:$0xff]
    %v235 = vld [vmem:[#allocation5 + $0x3b0] sm:$0xff]
    %v236 = vld [vmem:[#allocation5 + $0x3b8] sm:$0xff]
    %v237 = vld [vmem:[#allocation5 + $0x3c0] sm:$0xff]
    %v238 = vld [vmem:[#allocation5 + $0x3c8] sm:$0xff]
    %v239 = vld [vmem:[#allocation5 + $0x3d0] sm:$0xff]
    %v240 = vld [vmem:[#allocation5 + $0x3d8] sm:$0xff]
    %v241 = vld [vmem:[#allocation5 + $0x3e0] sm:$0xff]
    %v242 = vld [vmem:[#allocation5 + $0x3e8] sm:$0xff]
    %v243 = vld [vmem:[#allocation5 + $0x3f0] sm:$0xff]
    %v244 = vld [vmem:[#allocation5 + $0x3f8] sm:$0xff]
    %v245 = vld [vmem:[#allocation7] sm:$0x3]
    %v247 = vperm.slane %v245, 0
    %v248 = vperm.slane %v245, 1
    %v255 = vunpack.c.l.b16 %v113
    %v256 = vunpack.c.h.b16 %v113
    %v257 = vunpack.c.l.b16 %v114
    %v258 = vunpack.c.h.b16 %v114
    %v259 = vunpack.c.l.b16 %v115
    %v260 = vunpack.c.h.b16 %v115
    %v261 = vunpack.c.l.b16 %v116
    %v262 = vunpack.c.h.b16 %v116
    %v263 = vpack.c.b16 %v255, %v255
    %v264 = vpack.c.b16 %v256, %v256
    %v265 = vpack.c.b16 %v257, %v257
    %v266 = vpack.c.b16 %v258, %v258
    %v267 = vpack.c.b16 %v259, %v259
    %v268 = vpack.c.b16 %v260, %v260
    %v269 = vpack.c.b16 %v261, %v261
    %v270 = vpack.c.b16 %v262, %v262
    %v407 = vunpack.c.l.b16 %v117
    %v408 = vunpack.c.h.b16 %v117
    %v409 = vunpack.c.l.b16 %v118
    %v410 = vunpack.c.h.b16 %v118
    %v411 = vunpack.c.l.b16 %v119
    %v412 = vunpack.c.h.b16 %v119
    %v413 = vunpack.c.l.b16 %v120
    %v414 = vunpack.c.h.b16 %v120
    %v415 = vunpack.c.l.b16 %v121
    %v416 = vunpack.c.h.b16 %v121
    %v417 = vunpack.c.l.b16 %v122
    %v418 = vunpack.c.h.b16 %v122
    %v419 = vunpack.c.l.b16 %v123
    %v420 = vunpack.c.h.b16 %v123
    %v421 = vunpack.c.l.b16 %v124
    %v422 = vunpack.c.h.b16 %v124
    %v423 = vunpack.c.l.b16 %v125
    %v424 = vunpack.c.h.b16 %v125
    %v425 = vunpack.c.l.b16 %v126
    %v426 = vunpack.c.h.b16 %v126
    %v427 = vunpack.c.l.b16 %v127
    %v428 = vunpack.c.h.b16 %v127
    %v429 = vunpack.c.l.b16 %v128
    %v430 = vunpack.c.h.b16 %v128
    %v431 = vunpack.c.l.b16 %v129
    %v432 = vunpack.c.h.b16 %v129
    %v433 = vunpack.c.l.b16 %v130
    %v434 = vunpack.c.h.b16 %v130
    %v435 = vunpack.c.l.b16 %v131
    %v436 = vunpack.c.h.b16 %v131
    %v437 = vunpack.c.l.b16 %v132
    %v438 = vunpack.c.h.b16 %v132
    %v439 = vunpack.c.l.b16 %v133
    %v440 = vunpack.c.h.b16 %v133
    %v441 = vunpack.c.l.b16 %v134
    %v442 = vunpack.c.h.b16 %v134
    %v443 = vunpack.c.l.b16 %v135
    %v444 = vunpack.c.h.b16 %v135
    %v445 = vunpack.c.l.b16 %v136
    %v446 = vunpack.c.h.b16 %v136
    %v447 = vunpack.c.l.b16 %v137
    %v448 = vunpack.c.h.b16 %v137
    %v449 = vunpack.c.l.b16 %v138
    %v450 = vunpack.c.h.b16 %v138
    %v451 = vunpack.c.l.b16 %v139
    %v452 = vunpack.c.h.b16 %v139
    %v453 = vunpack.c.l.b16 %v140
    %v454 = vunpack.c.h.b16 %v140
    %v455 = vunpack.c.l.b16 %v141
    %v456 = vunpack.c.h.b16 %v141
    %v457 = vunpack.c.l.b16 %v142
    %v458 = vunpack.c.h.b16 %v142
    %v459 = vunpack.c.l.b16 %v143
    %v460 = vunpack.c.h.b16 %v143
    %v461 = vunpack.c.l.b16 %v144
    %v462 = vunpack.c.h.b16 %v144
    %v463 = vunpack.c.l.b16 %v145
    %v464 = vunpack.c.h.b16 %v145
    %v465 = vunpack.c.l.b16 %v146
    %v466 = vunpack.c.h.b16 %v146
    %v467 = vunpack.c.l.b16 %v147
    %v468 = vunpack.c.h.b16 %v147
    %v469 = vunpack.c.l.b16 %v148
    %v470 = vunpack.c.h.b16 %v148
    %v471 = vunpack.c.l.b16 %v149
    %v472 = vunpack.c.h.b16 %v149
    %v473 = vunpack.c.l.b16 %v150
    %v474 = vunpack.c.h.b16 %v150
    %v475 = vunpack.c.l.b16 %v151
    %v476 = vunpack.c.h.b16 %v151
    %v477 = vunpack.c.l.b16 %v152
    %v478 = vunpack.c.h.b16 %v152
    %v479 = vunpack.c.l.b16 %v153
    %v480 = vunpack.c.h.b16 %v153
    %v481 = vunpack.c.l.b16 %v154
    %v482 = vunpack.c.h.b16 %v154
    %v483 = vunpack.c.l.b16 %v155
    %v484 = vunpack.c.h.b16 %v155
    %v485 = vunpack.c.l.b16 %v156
    %v486 = vunpack.c.h.b16 %v156
    %v487 = vunpack.c.l.b16 %v157
    %v488 = vunpack.c.h.b16 %v157
    %v489 = vunpack.c.l.b16 %v158
    %v490 = vunpack.c.h.b16 %v158
    %v491 = vunpack.c.l.b16 %v159
    %v492 = vunpack.c.h.b16 %v159
    %v493 = vunpack.c.l.b16 %v160
    %v494 = vunpack.c.h.b16 %v160
    %v495 = vunpack.c.l.b16 %v161
    %v496 = vunpack.c.h.b16 %v161
    %v497 = vunpack.c.l.b16 %v162
    %v498 = vunpack.c.h.b16 %v162
    %v499 = vunpack.c.l.b16 %v163
    %v500 = vunpack.c.h.b16 %v163
    %v501 = vunpack.c.l.b16 %v164
    %v502 = vunpack.c.h.b16 %v164
    %v503 = vunpack.c.l.b16 %v165
    %v504 = vunpack.c.h.b16 %v165
    %v505 = vunpack.c.l.b16 %v166
    %v506 = vunpack.c.h.b16 %v166
    %v507 = vunpack.c.l.b16 %v167
    %v508 = vunpack.c.h.b16 %v167
    %v509 = vunpack.c.l.b16 %v168
    %v510 = vunpack.c.h.b16 %v168
    %v511 = vunpack.c.l.b16 %v169
    %v512 = vunpack.c.h.b16 %v169
    %v513 = vunpack.c.l.b16 %v170
    %v514 = vunpack.c.h.b16 %v170
    %v515 = vunpack.c.l.b16 %v171
    %v516 = vunpack.c.h.b16 %v171
    %v517 = vunpack.c.l.b16 %v172
    %v518 = vunpack.c.h.b16 %v172
    %v519 = vunpack.c.l.b16 %v173
    %v520 = vunpack.c.h.b16 %v173
    %v521 = vunpack.c.l.b16 %v174
    %v522 = vunpack.c.h.b16 %v174
    %v523 = vunpack.c.l.b16 %v175
    %v524 = vunpack.c.h.b16 %v175
    %v525 = vunpack.c.l.b16 %v176
    %v526 = vunpack.c.h.b16 %v176
    %v527 = vunpack.c.l.b16 %v177
    %v528 = vunpack.c.h.b16 %v177
    %v529 = vunpack.c.l.b16 %v178
    %v530 = vunpack.c.h.b16 %v178
    %v531 = vunpack.c.l.b16 %v179
    %v532 = vunpack.c.h.b16 %v179
    %v533 = vunpack.c.l.b16 %v180
    %v534 = vunpack.c.h.b16 %v180
    %v535 = vunpack.c.l.b16 %v181
    %v536 = vunpack.c.h.b16 %v181
    %v537 = vunpack.c.l.b16 %v182
    %v538 = vunpack.c.h.b16 %v182
    %v539 = vunpack.c.l.b16 %v183
    %v540 = vunpack.c.h.b16 %v183
    %v541 = vunpack.c.l.b16 %v184
    %v542 = vunpack.c.h.b16 %v184
    %v543 = vunpack.c.l.b16 %v185
    %v544 = vunpack.c.h.b16 %v185
    %v545 = vunpack.c.l.b16 %v186
    %v546 = vunpack.c.h.b16 %v186
    %v547 = vunpack.c.l.b16 %v187
    %v548 = vunpack.c.h.b16 %v187
    %v549 = vunpack.c.l.b16 %v188
    %v550 = vunpack.c.h.b16 %v188
    %v551 = vunpack.c.l.b16 %v189
    %v552 = vunpack.c.h.b16 %v189
    %v553 = vunpack.c.l.b16 %v190
    %v554 = vunpack.c.h.b16 %v190
    %v555 = vunpack.c.l.b16 %v191
    %v556 = vunpack.c.h.b16 %v191
    %v557 = vunpack.c.l.b16 %v192
    %v558 = vunpack.c.h.b16 %v192
    %v559 = vunpack.c.l.b16 %v193
    %v560 = vunpack.c.h.b16 %v193
    %v561 = vunpack.c.l.b16 %v194
    %v562 = vunpack.c.h.b16 %v194
    %v563 = vunpack.c.l.b16 %v195
    %v564 = vunpack.c.h.b16 %v195
    %v565 = vunpack.c.l.b16 %v196
    %v566 = vunpack.c.h.b16 %v196
    %v567 = vunpack.c.l.b16 %v197
    %v568 = vunpack.c.h.b16 %v197
    %v569 = vunpack.c.l.b16 %v198
    %v570 = vunpack.c.h.b16 %v198
    %v571 = vunpack.c.l.b16 %v199
    %v572 = vunpack.c.h.b16 %v199
    %v573 = vunpack.c.l.b16 %v200
    %v574 = vunpack.c.h.b16 %v200
    %v575 = vunpack.c.l.b16 %v201
    %v576 = vunpack.c.h.b16 %v201
    %v577 = vunpack.c.l.b16 %v202
    %v578 = vunpack.c.h.b16 %v202
    %v579 = vunpack.c.l.b16 %v203
    %v580 = vunpack.c.h.b16 %v203
    %v581 = vunpack.c.l.b16 %v204
    %v582 = vunpack.c.h.b16 %v204
    %v583 = vunpack.c.l.b16 %v205
    %v584 = vunpack.c.h.b16 %v205
    %v585 = vunpack.c.l.b16 %v206
    %v586 = vunpack.c.h.b16 %v206
    %v587 = vunpack.c.l.b16 %v207
    %v588 = vunpack.c.h.b16 %v207
    %v589 = vunpack.c.l.b16 %v208
    %v590 = vunpack.c.h.b16 %v208
    %v591 = vunpack.c.l.b16 %v209
    %v592 = vunpack.c.h.b16 %v209
    %v593 = vunpack.c.l.b16 %v210
    %v594 = vunpack.c.h.b16 %v210
    %v595 = vunpack.c.l.b16 %v211
    %v596 = vunpack.c.h.b16 %v211
    %v597 = vunpack.c.l.b16 %v212
    %v598 = vunpack.c.h.b16 %v212
    %v599 = vunpack.c.l.b16 %v213
    %v600 = vunpack.c.h.b16 %v213
    %v601 = vunpack.c.l.b16 %v214
    %v602 = vunpack.c.h.b16 %v214
    %v603 = vunpack.c.l.b16 %v215
    %v604 = vunpack.c.h.b16 %v215
    %v605 = vunpack.c.l.b16 %v216
    %v606 = vunpack.c.h.b16 %v216
    %v607 = vunpack.c.l.b16 %v217
    %v608 = vunpack.c.h.b16 %v217
    %v609 = vunpack.c.l.b16 %v218
    %v610 = vunpack.c.h.b16 %v218
    %v611 = vunpack.c.l.b16 %v219
    %v612 = vunpack.c.h.b16 %v219
    %v613 = vunpack.c.l.b16 %v220
    %v614 = vunpack.c.h.b16 %v220
    %v615 = vunpack.c.l.b16 %v221
    %v616 = vunpack.c.h.b16 %v221
    %v617 = vunpack.c.l.b16 %v222
    %v618 = vunpack.c.h.b16 %v222
    %v619 = vunpack.c.l.b16 %v223
    %v620 = vunpack.c.h.b16 %v223
    %v621 = vunpack.c.l.b16 %v224
    %v622 = vunpack.c.h.b16 %v224
    %v623 = vunpack.c.l.b16 %v225
    %v624 = vunpack.c.h.b16 %v225
    %v625 = vunpack.c.l.b16 %v226
    %v626 = vunpack.c.h.b16 %v226
    %v627 = vunpack.c.l.b16 %v227
    %v628 = vunpack.c.h.b16 %v227
    %v629 = vunpack.c.l.b16 %v228
    %v630 = vunpack.c.h.b16 %v228
    %v631 = vunpack.c.l.b16 %v229
    %v632 = vunpack.c.h.b16 %v229
    %v633 = vunpack.c.l.b16 %v230
    %v634 = vunpack.c.h.b16 %v230
    %v635 = vunpack.c.l.b16 %v231
    %v636 = vunpack.c.h.b16 %v231
    %v637 = vunpack.c.l.b16 %v232
    %v638 = vunpack.c.h.b16 %v232
    %v639 = vunpack.c.l.b16 %v233
    %v640 = vunpack.c.h.b16 %v233
    %v641 = vunpack.c.l.b16 %v234
    %v642 = vunpack.c.h.b16 %v234
    %v643 = vunpack.c.l.b16 %v235
    %v644 = vunpack.c.h.b16 %v235
    %v645 = vunpack.c.l.b16 %v236
    %v646 = vunpack.c.h.b16 %v236
    %v647 = vunpack.c.l.b16 %v237
    %v648 = vunpack.c.h.b16 %v237
    %v649 = vunpack.c.l.b16 %v238
    %v650 = vunpack.c.h.b16 %v238
    %v651 = vunpack.c.l.b16 %v239
    %v652 = vunpack.c.h.b16 %v239
    %v653 = vunpack.c.l.b16 %v240
    %v654 = vunpack.c.h.b16 %v240
    %v655 = vunpack.c.l.b16 %v241
    %v656 = vunpack.c.h.b16 %v241
    %v657 = vunpack.c.l.b16 %v242
    %v658 = vunpack.c.h.b16 %v242
    %v659 = vunpack.c.l.b16 %v243
    %v660 = vunpack.c.h.b16 %v243
    %v661 = vunpack.c.l.b16 %v244
    %v662 = vunpack.c.h.b16 %v244
    %v663 = vpack.c.b16 %v409, %v407
    %v664 = vpack.c.b16 %v410, %v408
    %v665 = vpack.c.b16 %v413, %v411
    %v666 = vpack.c.b16 %v414, %v412
    %v667 = vpack.c.b16 %v417, %v415
    %v668 = vpack.c.b16 %v418, %v416
    %v669 = vpack.c.b16 %v421, %v419
    %v670 = vpack.c.b16 %v422, %v420
    %v671 = vpack.c.b16 %v425, %v423
    %v672 = vpack.c.b16 %v426, %v424
    %v673 = vpack.c.b16 %v429, %v427
    %v674 = vpack.c.b16 %v430, %v428
    %v675 = vpack.c.b16 %v433, %v431
    %v676 = vpack.c.b16 %v434, %v432
    %v677 = vpack.c.b16 %v437, %v435
    %v678 = vpack.c.b16 %v438, %v436
    %v679 = vpack.c.b16 %v441, %v439
    %v680 = vpack.c.b16 %v442, %v440
    %v681 = vpack.c.b16 %v445, %v443
    %v682 = vpack.c.b16 %v446, %v444
    %v683 = vpack.c.b16 %v449, %v447
    %v684 = vpack.c.b16 %v450, %v448
    %v685 = vpack.c.b16 %v453, %v451
    %v686 = vpack.c.b16 %v454, %v452
    %v687 = vpack.c.b16 %v457, %v455
    %v688 = vpack.c.b16 %v458, %v456
    %v689 = vpack.c.b16 %v461, %v459
    %v690 = vpack.c.b16 %v462, %v460
    %v691 = vpack.c.b16 %v465, %v463
    %v692 = vpack.c.b16 %v466, %v464
    %v693 = vpack.c.b16 %v469, %v467
    %v694 = vpack.c.b16 %v470, %v468
    %v695 = vpack.c.b16 %v473, %v471
    %v696 = vpack.c.b16 %v474, %v472
    %v697 = vpack.c.b16 %v477, %v475
    %v698 = vpack.c.b16 %v478, %v476
    %v699 = vpack.c.b16 %v481, %v479
    %v700 = vpack.c.b16 %v482, %v480
    %v701 = vpack.c.b16 %v485, %v483
    %v702 = vpack.c.b16 %v486, %v484
    %v703 = vpack.c.b16 %v489, %v487
    %v704 = vpack.c.b16 %v490, %v488
    %v705 = vpack.c.b16 %v493, %v491
    %v706 = vpack.c.b16 %v494, %v492
    %v707 = vpack.c.b16 %v497, %v495
    %v708 = vpack.c.b16 %v498, %v496
    %v709 = vpack.c.b16 %v501, %v499
    %v710 = vpack.c.b16 %v502, %v500
    %v711 = vpack.c.b16 %v505, %v503
    %v712 = vpack.c.b16 %v506, %v504
    %v713 = vpack.c.b16 %v509, %v507
    %v714 = vpack.c.b16 %v510, %v508
    %v715 = vpack.c.b16 %v513, %v511
    %v716 = vpack.c.b16 %v514, %v512
    %v717 = vpack.c.b16 %v517, %v515
    %v718 = vpack.c.b16 %v518, %v516
    %v719 = vpack.c.b16 %v521, %v519
    %v720 = vpack.c.b16 %v522, %v520
    %v721 = vpack.c.b16 %v525, %v523
    %v722 = vpack.c.b16 %v526, %v524
    %v723 = vpack.c.b16 %v529, %v527
    %v724 = vpack.c.b16 %v530, %v528
    %v725 = vpack.c.b16 %v533, %v531
    %v726 = vpack.c.b16 %v534, %v532
    %v727 = vpack.c.b16 %v537, %v535
    %v728 = vpack.c.b16 %v538, %v536
    %v729 = vpack.c.b16 %v541, %v539
    %v730 = vpack.c.b16 %v542, %v540
    %v731 = vpack.c.b16 %v545, %v543
    %v732 = vpack.c.b16 %v546, %v544
    %v733 = vpack.c.b16 %v549, %v547
    %v734 = vpack.c.b16 %v550, %v548
    %v735 = vpack.c.b16 %v553, %v551
    %v736 = vpack.c.b16 %v554, %v552
    %v737 = vpack.c.b16 %v557, %v555
    %v738 = vpack.c.b16 %v558, %v556
    %v739 = vpack.c.b16 %v561, %v559
    %v740 = vpack.c.b16 %v562, %v560
    %v741 = vpack.c.b16 %v565, %v563
    %v742 = vpack.c.b16 %v566, %v564
    %v743 = vpack.c.b16 %v569, %v567
    %v744 = vpack.c.b16 %v570, %v568
    %v745 = vpack.c.b16 %v573, %v571
    %v746 = vpack.c.b16 %v574, %v572
    %v747 = vpack.c.b16 %v577, %v575
    %v748 = vpack.c.b16 %v578, %v576
    %v749 = vpack.c.b16 %v581, %v579
    %v750 = vpack.c.b16 %v582, %v580
    %v751 = vpack.c.b16 %v585, %v583
    %v752 = vpack.c.b16 %v586, %v584
    %v753 = vpack.c.b16 %v589, %v587
    %v754 = vpack.c.b16 %v590, %v588
    %v755 = vpack.c.b16 %v593, %v591
    %v756 = vpack.c.b16 %v594, %v592
    %v757 = vpack.c.b16 %v597, %v595
    %v758 = vpack.c.b16 %v598, %v596
    %v759 = vpack.c.b16 %v601, %v599
    %v760 = vpack.c.b16 %v602, %v600
    %v761 = vpack.c.b16 %v605, %v603
    %v762 = vpack.c.b16 %v606, %v604
    %v763 = vpack.c.b16 %v609, %v607
    %v764 = vpack.c.b16 %v610, %v608
    %v765 = vpack.c.b16 %v613, %v611
    %v766 = vpack.c.b16 %v614, %v612
    %v767 = vpack.c.b16 %v617, %v615
    %v768 = vpack.c.b16 %v618, %v616
    %v769 = vpack.c.b16 %v621, %v619
    %v770 = vpack.c.b16 %v622, %v620
    %v771 = vpack.c.b16 %v625, %v623
    %v772 = vpack.c.b16 %v626, %v624
    %v773 = vpack.c.b16 %v629, %v627
    %v774 = vpack.c.b16 %v630, %v628
    %v775 = vpack.c.b16 %v633, %v631
    %v776 = vpack.c.b16 %v634, %v632
    %v777 = vpack.c.b16 %v637, %v635
    %v778 = vpack.c.b16 %v638, %v636
    %v779 = vpack.c.b16 %v641, %v639
    %v780 = vpack.c.b16 %v642, %v640
    %v781 = vpack.c.b16 %v645, %v643
    %v782 = vpack.c.b16 %v646, %v644
    %v783 = vpack.c.b16 %v649, %v647
    %v784 = vpack.c.b16 %v650, %v648
    %v785 = vpack.c.b16 %v653, %v651
    %v786 = vpack.c.b16 %v654, %v652
    %v787 = vpack.c.b16 %v657, %v655
    %v788 = vpack.c.b16 %v658, %v656
    %v789 = vpack.c.b16 %v661, %v659
    %v790 = vpack.c.b16 %v662, %v660
    %919 = vmatpush.bf16.msra.mxu0 %v677
    %920 = vmatpush.bf16.msra.mxu0 %v675
    %921 = vmatpush.bf16.msra.mxu0 %v673
    %922 = vmatpush.bf16.msra.mxu0 %v671
    %923 = vmatpush.bf16.msra.mxu0 %v669
    %924 = vmatpush.bf16.msra.mxu0 %v667
    %925 = vmatpush.bf16.msra.mxu0 %v665
    %926 = vmatpush.bf16.msra.mxu0 %v663
    %927 = vmatmul.bf16.gmra.mxu0 %v263
    %v928 = vpop.f32.mrf.mxu0
    %v929 = vadd.f32 %v247, %v928
    %v930 = vpop.f32.mrf.mxu0
    %931 = vdwg.mxu0
    %932 = vmatpush.bf16.msra.mxu0 %v693
    %933 = vmatpush.bf16.msra.mxu0 %v691
    %934 = vmatpush.bf16.msra.mxu0 %v689
    %935 = vmatpush.bf16.msra.mxu0 %v687
    %936 = vmatpush.bf16.msra.mxu0 %v685
    %937 = vmatpush.bf16.msra.mxu0 %v683
    %938 = vmatpush.bf16.msra.mxu0 %v681
    %939 = vmatpush.bf16.msra.mxu0 %v679
    %940 = vmatmul.bf16.gmra.mxu0 %v264
    %v941 = vpop.f32.mrf.mxu0
    %v942 = vadd.f32 %v929, %v941
    %v943 = vpop.f32.mrf.mxu0
    %944 = vdwg.mxu0
    %945 = vmatpush.bf16.msra.mxu0 %v709
    %946 = vmatpush.bf16.msra.mxu0 %v707
    %947 = vmatpush.bf16.msra.mxu0 %v705
    %948 = vmatpush.bf16.msra.mxu0 %v703
    %949 = vmatpush.bf16.msra.mxu0 %v701
    %950 = vmatpush.bf16.msra.mxu0 %v699
    %951 = vmatpush.bf16.msra.mxu0 %v697
    %952 = vmatpush.bf16.msra.mxu0 %v695
    %953 = vmatmul.bf16.gmra.mxu0 %v265
    %v954 = vpop.f32.mrf.mxu0
    %v955 = vadd.f32 %v942, %v954
    %v956 = vpop.f32.mrf.mxu0
    %957 = vdwg.mxu0
    %958 = vmatpush.bf16.msra.mxu0 %v725
    %959 = vmatpush.bf16.msra.mxu0 %v723
    %960 = vmatpush.bf16.msra.mxu0 %v721
    %961 = vmatpush.bf16.msra.mxu0 %v719
    %962 = vmatpush.bf16.msra.mxu0 %v717
    %963 = vmatpush.bf16.msra.mxu0 %v715
    %964 = vmatpush.bf16.msra.mxu0 %v713
    %965 = vmatpush.bf16.msra.mxu0 %v711
    %966 = vmatmul.bf16.gmra.mxu0 %v266
    %v967 = vpop.f32.mrf.mxu0
    %v968 = vadd.f32 %v955, %v967
    %v969 = vpop.f32.mrf.mxu0
    %970 = vdwg.mxu0
    %971 = vmatpush.bf16.msra.mxu0 %v741
    %972 = vmatpush.bf16.msra.mxu0 %v739
    %973 = vmatpush.bf16.msra.mxu0 %v737
    %974 = vmatpush.bf16.msra.mxu0 %v735
    %975 = vmatpush.bf16.msra.mxu0 %v733
    %976 = vmatpush.bf16.msra.mxu0 %v731
    %977 = vmatpush.bf16.msra.mxu0 %v729
    %978 = vmatpush.bf16.msra.mxu0 %v727
    %979 = vmatmul.bf16.gmra.mxu0 %v267
    %v980 = vpop.f32.mrf.mxu0
    %v981 = vadd.f32 %v968, %v980
    %v982 = vpop.f32.mrf.mxu0
    %983 = vdwg.mxu0
    %984 = vmatpush.bf16.msra.mxu0 %v757
    %985 = vmatpush.bf16.msra.mxu0 %v755
    %986 = vmatpush.bf16.msra.mxu0 %v753
    %987 = vmatpush.bf16.msra.mxu0 %v751
    %988 = vmatpush.bf16.msra.mxu0 %v749
    %989 = vmatpush.bf16.msra.mxu0 %v747
    %990 = vmatpush.bf16.msra.mxu0 %v745
    %991 = vmatpush.bf16.msra.mxu0 %v743
    %992 = vmatmul.bf16.gmra.mxu0 %v268
    %v993 = vpop.f32.mrf.mxu0
    %v994 = vadd.f32 %v981, %v993
    %v995 = vpop.f32.mrf.mxu0
    %996 = vdwg.mxu0
    %997 = vmatpush.bf16.msra.mxu0 %v773
    %998 = vmatpush.bf16.msra.mxu0 %v771
    %999 = vmatpush.bf16.msra.mxu0 %v769
    %1000 = vmatpush.bf16.msra.mxu0 %v767
    %1001 = vmatpush.bf16.msra.mxu0 %v765
    %1002 = vmatpush.bf16.msra.mxu0 %v763
    %1003 = vmatpush.bf16.msra.mxu0 %v761
    %1004 = vmatpush.bf16.msra.mxu0 %v759
    %1005 = vmatmul.bf16.gmra.mxu0 %v269
    %v1006 = vpop.f32.mrf.mxu0
    %v1007 = vadd.f32 %v994, %v1006
    %v1008 = vpop.f32.mrf.mxu0
    %1009 = vdwg.mxu0
    %1010 = vmatpush.bf16.msra.mxu0 %v789
    %1011 = vmatpush.bf16.msra.mxu0 %v787
    %1012 = vmatpush.bf16.msra.mxu0 %v785
    %1013 = vmatpush.bf16.msra.mxu0 %v783
    %1014 = vmatpush.bf16.msra.mxu0 %v781
    %1015 = vmatpush.bf16.msra.mxu0 %v779
    %1016 = vmatpush.bf16.msra.mxu0 %v777
    %1017 = vmatpush.bf16.msra.mxu0 %v775
    %1018 = vmatmul.bf16.gmra.mxu0 %v270
    %v1019 = vpop.f32.mrf.mxu0
    %v1020 = vadd.f32 %v1007, %v1019
    %v1021 = vpop.f32.mrf.mxu0
    %1022 = vdwg.mxu0
    %1023 = vmatpush.bf16.msra.mxu0 %v678
    %1024 = vmatpush.bf16.msra.mxu0 %v676
    %1025 = vmatpush.bf16.msra.mxu0 %v674
    %1026 = vmatpush.bf16.msra.mxu0 %v672
    %1027 = vmatpush.bf16.msra.mxu0 %v670
    %1028 = vmatpush.bf16.msra.mxu0 %v668
    %1029 = vmatpush.bf16.msra.mxu0 %v666
    %1030 = vmatpush.bf16.msra.mxu0 %v664
    %1031 = vmatmul.bf16.gmra.mxu0 %v263
    %v1032 = vpop.f32.mrf.mxu0
    %v1033 = vadd.f32 %v248, %v1032
    %v1034 = vpop.f32.mrf.mxu0
    %1035 = vdwg.mxu0
    %1036 = vmatpush.bf16.msra.mxu0 %v694
    %1037 = vmatpush.bf16.msra.mxu0 %v692
    %1038 = vmatpush.bf16.msra.mxu0 %v690
    %1039 = vmatpush.bf16.msra.mxu0 %v688
    %1040 = vmatpush.bf16.msra.mxu0 %v686
    %1041 = vmatpush.bf16.msra.mxu0 %v684
    %1042 = vmatpush.bf16.msra.mxu0 %v682
    %1043 = vmatpush.bf16.msra.mxu0 %v680
    %1044 = vmatmul.bf16.gmra.mxu0 %v264
    %v1045 = vpop.f32.mrf.mxu0
    %v1046 = vadd.f32 %v1033, %v1045
    %v1047 = vpop.f32.mrf.mxu0
    %1048 = vdwg.mxu0
    %1049 = vmatpush.bf16.msra.mxu0 %v710
    %1050 = vmatpush.bf16.msra.mxu0 %v708
    %1051 = vmatpush.bf16.msra.mxu0 %v706
    %1052 = vmatpush.bf16.msra.mxu0 %v704
    %1053 = vmatpush.bf16.msra.mxu0 %v702
    %1054 = vmatpush.bf16.msra.mxu0 %v700
    %1055 = vmatpush.bf16.msra.mxu0 %v698
    %1056 = vmatpush.bf16.msra.mxu0 %v696
    %1057 = vmatmul.bf16.gmra.mxu0 %v265
    %v1058 = vpop.f32.mrf.mxu0
    %v1059 = vadd.f32 %v1046, %v1058
    %v1060 = vpop.f32.mrf.mxu0
    %1061 = vdwg.mxu0
    %1062 = vmatpush.bf16.msra.mxu0 %v726
    %1063 = vmatpush.bf16.msra.mxu0 %v724
    %1064 = vmatpush.bf16.msra.mxu0 %v722
    %1065 = vmatpush.bf16.msra.mxu0 %v720
    %1066 = vmatpush.bf16.msra.mxu0 %v718
    %1067 = vmatpush.bf16.msra.mxu0 %v716
    %1068 = vmatpush.bf16.msra.mxu0 %v714
    %1069 = vmatpush.bf16.msra.mxu0 %v712
    %1070 = vmatmul.bf16.gmra.mxu0 %v266
    %v1071 = vpop.f32.mrf.mxu0
    %v1072 = vadd.f32 %v1059, %v1071
    %v1073 = vpop.f32.mrf.mxu0
    %1074 = vdwg.mxu0
    %1075 = vmatpush.bf16.msra.mxu0 %v742
    %1076 = vmatpush.bf16.msra.mxu0 %v740
    %1077 = vmatpush.bf16.msra.mxu0 %v738
    %1078 = vmatpush.bf16.msra.mxu0 %v736
    %1079 = vmatpush.bf16.msra.mxu0 %v734
    %1080 = vmatpush.bf16.msra.mxu0 %v732
    %1081 = vmatpush.bf16.msra.mxu0 %v730
    %1082 = vmatpush.bf16.msra.mxu0 %v728
    %1083 = vmatmul.bf16.gmra.mxu0 %v267
    %v1084 = vpop.f32.mrf.mxu0
    %v1085 = vadd.f32 %v1072, %v1084
    %v1086 = vpop.f32.mrf.mxu0
    %1087 = vdwg.mxu0
    %1088 = vmatpush.bf16.msra.mxu0 %v758
    %1089 = vmatpush.bf16.msra.mxu0 %v756
    %1090 = vmatpush.bf16.msra.mxu0 %v754
    %1091 = vmatpush.bf16.msra.mxu0 %v752
    %1092 = vmatpush.bf16.msra.mxu0 %v750
    %1093 = vmatpush.bf16.msra.mxu0 %v748
    %1094 = vmatpush.bf16.msra.mxu0 %v746
    %1095 = vmatpush.bf16.msra.mxu0 %v744
    %1096 = vmatmul.bf16.gmra.mxu0 %v268
    %v1097 = vpop.f32.mrf.mxu0
    %v1098 = vadd.f32 %v1085, %v1097
    %v1099 = vpop.f32.mrf.mxu0
    %1100 = vdwg.mxu0
    %1101 = vmatpush.bf16.msra.mxu0 %v774
    %1102 = vmatpush.bf16.msra.mxu0 %v772
    %1103 = vmatpush.bf16.msra.mxu0 %v770
    %1104 = vmatpush.bf16.msra.mxu0 %v768
    %1105 = vmatpush.bf16.msra.mxu0 %v766
    %1106 = vmatpush.bf16.msra.mxu0 %v764
    %1107 = vmatpush.bf16.msra.mxu0 %v762
    %1108 = vmatpush.bf16.msra.mxu0 %v760
    %1109 = vmatmul.bf16.gmra.mxu0 %v269
    %v1110 = vpop.f32.mrf.mxu0
    %v1111 = vadd.f32 %v1098, %v1110
    %v1112 = vpop.f32.mrf.mxu0
    %1113 = vdwg.mxu0
    %1114 = vmatpush.bf16.msra.mxu0 %v790
    %1115 = vmatpush.bf16.msra.mxu0 %v788
    %1116 = vmatpush.bf16.msra.mxu0 %v786
    %1117 = vmatpush.bf16.msra.mxu0 %v784
    %1118 = vmatpush.bf16.msra.mxu0 %v782
    %1119 = vmatpush.bf16.msra.mxu0 %v780
    %1120 = vmatpush.bf16.msra.mxu0 %v778
    %1121 = vmatpush.bf16.msra.mxu0 %v776
    %1122 = vmatmul.bf16.gmra.mxu0 %v270
    %v1123 = vpop.f32.mrf.mxu0
    %v1124 = vadd.f32 %v1111, %v1123
    %v1125 = vpop.f32.mrf.mxu0
    %1126 = vdwg.mxu0
    %v1127 = vmul.f32 %v1124, 0.5
    %v1128 = vmul.f32 %v1127, 1.442695
    %v1129 = vpow.pop %v1128
    %v1130 = vld [vmem:[#allocation11] sm:$0xff]
    %v1131 = vmul.f32 %v1129, %v1130
    %v1132 = vadd.f32 %v1020, %v1131
    %v1133 = vpack.c.bf16 %v1132, %v1132
    %v1134 = vld [vmem:[#allocation8] sm:$0xff]
    %v1135 = vld [vmem:[#allocation8 + $0x8] sm:$0xff]
    %v1136 = vld [vmem:[#allocation8 + $0x10] sm:$0xff]
    %v1137 = vld [vmem:[#allocation8 + $0x18] sm:$0xff]
    %v1138 = vld [vmem:[#allocation8 + $0x20] sm:$0xff]
    %v1139 = vld [vmem:[#allocation8 + $0x28] sm:$0xff]
    %v1140 = vld [vmem:[#allocation8 + $0x30] sm:$0xff]
    %v1141 = vld [vmem:[#allocation8 + $0x38] sm:$0xff]
    %v1142 = vld [vmem:[#allocation8 + $0x40] sm:$0xff]
    %v1143 = vld [vmem:[#allocation8 + $0x48] sm:$0xff]
    %v1144 = vld [vmem:[#allocation8 + $0x50] sm:$0xff]
    %v1145 = vld [vmem:[#allocation8 + $0x58] sm:$0xff]
    %v1146 = vld [vmem:[#allocation8 + $0x60] sm:$0xff]
    %v1147 = vld [vmem:[#allocation8 + $0x68] sm:$0xff]
    %v1148 = vld [vmem:[#allocation8 + $0x70] sm:$0xff]
    %v1149 = vld [vmem:[#allocation8 + $0x78] sm:$0xff]
    %v1150 = vld [vmem:[#allocation8 + $0x80] sm:$0xff]
    %v1151 = vld [vmem:[#allocation8 + $0x88] sm:$0xff]
    %v1152 = vld [vmem:[#allocation8 + $0x90] sm:$0xff]
    %v1153 = vld [vmem:[#allocation8 + $0x98] sm:$0xff]
    %v1154 = vld [vmem:[#allocation8 + $0xa0] sm:$0xff]
    %v1155 = vld [vmem:[#allocation8 + $0xa8] sm:$0xff]
    %v1156 = vld [vmem:[#allocation8 + $0xb0] sm:$0xff]
    %v1157 = vld [vmem:[#allocation8 + $0xb8] sm:$0xff]
    %v1158 = vld [vmem:[#allocation8 + $0xc0] sm:$0xff]
    %v1159 = vld [vmem:[#allocation8 + $0xc8] sm:$0xff]
    %v1160 = vld [vmem:[#allocation8 + $0xd0] sm:$0xff]
    %v1161 = vld [vmem:[#allocation8 + $0xd8] sm:$0xff]
    %v1162 = vld [vmem:[#allocation8 + $0xe0] sm:$0xff]
    %v1163 = vld [vmem:[#allocation8 + $0xe8] sm:$0xff]
    %v1164 = vld [vmem:[#allocation8 + $0xf0] sm:$0xff]
    %v1165 = vld [vmem:[#allocation8 + $0xf8] sm:$0xff]
    %v1166 = vld [vmem:[#allocation8 + $0x100] sm:$0xff]
    %v1167 = vld [vmem:[#allocation8 + $0x108] sm:$0xff]
    %v1168 = vld [vmem:[#allocation8 + $0x110] sm:$0xff]
    %v1169 = vld [vmem:[#allocation8 + $0x118] sm:$0xff]
    %v1170 = vld [vmem:[#allocation8 + $0x120] sm:$0xff]
    %v1171 = vld [vmem:[#allocation8 + $0x128] sm:$0xff]
    %v1172 = vld [vmem:[#allocation8 + $0x130] sm:$0xff]
    %v1173 = vld [vmem:[#allocation8 + $0x138] sm:$0xff]
    %v1174 = vld [vmem:[#allocation8 + $0x140] sm:$0xff]
    %v1175 = vld [vmem:[#allocation8 + $0x148] sm:$0xff]
    %v1176 = vld [vmem:[#allocation8 + $0x150] sm:$0xff]
    %v1177 = vld [vmem:[#allocation8 + $0x158] sm:$0xff]
    %v1178 = vld [vmem:[#allocation8 + $0x160] sm:$0xff]
    %v1179 = vld [vmem:[#allocation8 + $0x168] sm:$0xff]
    %v1180 = vld [vmem:[#allocation8 + $0x170] sm:$0xff]
    %v1181 = vld [vmem:[#allocation8 + $0x178] sm:$0xff]
    %v1182 = vld [vmem:[#allocation8 + $0x180] sm:$0xff]
    %v1183 = vld [vmem:[#allocation8 + $0x188] sm:$0xff]
    %v1184 = vld [vmem:[#allocation8 + $0x190] sm:$0xff]
    %v1185 = vld [vmem:[#allocation8 + $0x198] sm:$0xff]
    %v1186 = vld [vmem:[#allocation8 + $0x1a0] sm:$0xff]
    %v1187 = vld [vmem:[#allocation8 + $0x1a8] sm:$0xff]
    %v1188 = vld [vmem:[#allocation8 + $0x1b0] sm:$0xff]
    %v1189 = vld [vmem:[#allocation8 + $0x1b8] sm:$0xff]
    %v1190 = vld [vmem:[#allocation8 + $0x1c0] sm:$0xff]
    %v1191 = vld [vmem:[#allocation8 + $0x1c8] sm:$0xff]
    %v1192 = vld [vmem:[#allocation8 + $0x1d0] sm:$0xff]
    %v1193 = vld [vmem:[#allocation8 + $0x1d8] sm:$0xff]
    %v1194 = vld [vmem:[#allocation8 + $0x1e0] sm:$0xff]
    %v1195 = vld [vmem:[#allocation8 + $0x1e8] sm:$0xff]
    %v1196 = vld [vmem:[#allocation8 + $0x1f0] sm:$0xff]
    %v1197 = vld [vmem:[#allocation8 + $0x1f8] sm:$0xff]
    %v1198 = vld [vmem:[#allocation10] sm:$0xff]
    %v1200 = vperm.slane %v1198, 0
    %v1201 = vperm.slane %v1198, 1
    %v1202 = vperm.slane %v1198, 2
    %v1203 = vperm.slane %v1198, 3
    %v1204 = vperm.slane %v1198, 4
    %v1205 = vperm.slane %v1198, 5
    %v1206 = vperm.slane %v1198, 6
    %v1207 = vperm.slane %v1198, 7
    %v1280 = vunpack.c.l.b16 %v1134
    %v1281 = vunpack.c.h.b16 %v1134
    %v1282 = vunpack.c.l.b16 %v1135
    %v1283 = vunpack.c.h.b16 %v1135
    %v1284 = vunpack.c.l.b16 %v1136
    %v1285 = vunpack.c.h.b16 %v1136
    %v1286 = vunpack.c.l.b16 %v1137
    %v1287 = vunpack.c.h.b16 %v1137
    %v1288 = vunpack.c.l.b16 %v1138
    %v1289 = vunpack.c.h.b16 %v1138
    %v1290 = vunpack.c.l.b16 %v1139
    %v1291 = vunpack.c.h.b16 %v1139
    %v1292 = vunpack.c.l.b16 %v1140
    %v1293 = vunpack.c.h.b16 %v1140
    %v1294 = vunpack.c.l.b16 %v1141
    %v1295 = vunpack.c.h.b16 %v1141
    %v1296 = vunpack.c.l.b16 %v1142
    %v1297 = vunpack.c.h.b16 %v1142
    %v1298 = vunpack.c.l.b16 %v1143
    %v1299 = vunpack.c.h.b16 %v1143
    %v1300 = vunpack.c.l.b16 %v1144
    %v1301 = vunpack.c.h.b16 %v1144
    %v1302 = vunpack.c.l.b16 %v1145
    %v1303 = vunpack.c.h.b16 %v1145
    %v1304 = vunpack.c.l.b16 %v1146
    %v1305 = vunpack.c.h.b16 %v1146
    %v1306 = vunpack.c.l.b16 %v1147
    %v1307 = vunpack.c.h.b16 %v1147
    %v1308 = vunpack.c.l.b16 %v1148
    %v1309 = vunpack.c.h.b16 %v1148
    %v1310 = vunpack.c.l.b16 %v1149
    %v1311 = vunpack.c.h.b16 %v1149
    %v1312 = vunpack.c.l.b16 %v1150
    %v1313 = vunpack.c.h.b16 %v1150
    %v1314 = vunpack.c.l.b16 %v1151
    %v1315 = vunpack.c.h.b16 %v1151
    %v1316 = vunpack.c.l.b16 %v1152
    %v1317 = vunpack.c.h.b16 %v1152
    %v1318 = vunpack.c.l.b16 %v1153
    %v1319 = vunpack.c.h.b16 %v1153
    %v1320 = vunpack.c.l.b16 %v1154
    %v1321 = vunpack.c.h.b16 %v1154
    %v1322 = vunpack.c.l.b16 %v1155
    %v1323 = vunpack.c.h.b16 %v1155
    %v1324 = vunpack.c.l.b16 %v1156
    %v1325 = vunpack.c.h.b16 %v1156
    %v1326 = vunpack.c.l.b16 %v1157
    %v1327 = vunpack.c.h.b16 %v1157
    %v1328 = vunpack.c.l.b16 %v1158
    %v1329 = vunpack.c.h.b16 %v1158
    %v1330 = vunpack.c.l.b16 %v1159
    %v1331 = vunpack.c.h.b16 %v1159
    %v1332 = vunpack.c.l.b16 %v1160
    %v1333 = vunpack.c.h.b16 %v1160
    %v1334 = vunpack.c.l.b16 %v1161
    %v1335 = vunpack.c.h.b16 %v1161
    %v1336 = vunpack.c.l.b16 %v1162
    %v1337 = vunpack.c.h.b16 %v1162
    %v1338 = vunpack.c.l.b16 %v1163
    %v1339 = vunpack.c.h.b16 %v1163
    %v1340 = vunpack.c.l.b16 %v1164
    %v1341 = vunpack.c.h.b16 %v1164
    %v1342 = vunpack.c.l.b16 %v1165
    %v1343 = vunpack.c.h.b16 %v1165
    %v1344 = vunpack.c.l.b16 %v1166
    %v1345 = vunpack.c.h.b16 %v1166
    %v1346 = vunpack.c.l.b16 %v1167
    %v1347 = vunpack.c.h.b16 %v1167
    %v1348 = vunpack.c.l.b16 %v1168
    %v1349 = vunpack.c.h.b16 %v1168
    %v1350 = vunpack.c.l.b16 %v1169
    %v1351 = vunpack.c.h.b16 %v1169
    %v1352 = vunpack.c.l.b16 %v1170
    %v1353 = vunpack.c.h.b16 %v1170
    %v1354 = vunpack.c.l.b16 %v1171
    %v1355 = vunpack.c.h.b16 %v1171
    %v1356 = vunpack.c.l.b16 %v1172
    %v1357 = vunpack.c.h.b16 %v1172
    %v1358 = vunpack.c.l.b16 %v1173
    %v1359 = vunpack.c.h.b16 %v1173
    %v1360 = vunpack.c.l.b16 %v1174
    %v1361 = vunpack.c.h.b16 %v1174
    %v1362 = vunpack.c.l.b16 %v1175
    %v1363 = vunpack.c.h.b16 %v1175
    %v1364 = vunpack.c.l.b16 %v1176
    %v1365 = vunpack.c.h.b16 %v1176
    %v1366 = vunpack.c.l.b16 %v1177
    %v1367 = vunpack.c.h.b16 %v1177
    %v1368 = vunpack.c.l.b16 %v1178
    %v1369 = vunpack.c.h.b16 %v1178
    %v1370 = vunpack.c.l.b16 %v1179
    %v1371 = vunpack.c.h.b16 %v1179
    %v1372 = vunpack.c.l.b16 %v1180
    %v1373 = vunpack.c.h.b16 %v1180
    %v1374 = vunpack.c.l.b16 %v1181
    %v1375 = vunpack.c.h.b16 %v1181
    %v1376 = vunpack.c.l.b16 %v1182
    %v1377 = vunpack.c.h.b16 %v1182
    %v1378 = vunpack.c.l.b16 %v1183
    %v1379 = vunpack.c.h.b16 %v1183
    %v1380 = vunpack.c.l.b16 %v1184
    %v1381 = vunpack.c.h.b16 %v1184
    %v1382 = vunpack.c.l.b16 %v1185
    %v1383 = vunpack.c.h.b16 %v1185
    %v1384 = vunpack.c.l.b16 %v1186
    %v1385 = vunpack.c.h.b16 %v1186
    %v1386 = vunpack.c.l.b16 %v1187
    %v1387 = vunpack.c.h.b16 %v1187
    %v1388 = vunpack.c.l.b16 %v1188
    %v1389 = vunpack.c.h.b16 %v1188
    %v1390 = vunpack.c.l.b16 %v1189
    %v1391 = vunpack.c.h.b16 %v1189
    %v1392 = vunpack.c.l.b16 %v1190
    %v1393 = vunpack.c.h.b16 %v1190
    %v1394 = vunpack.c.l.b16 %v1191
    %v1395 = vunpack.c.h.b16 %v1191
    %v1396 = vunpack.c.l.b16 %v1192
    %v1397 = vunpack.c.h.b16 %v1192
    %v1398 = vunpack.c.l.b16 %v1193
    %v1399 = vunpack.c.h.b16 %v1193
    %v1400 = vunpack.c.l.b16 %v1194
    %v1401 = vunpack.c.h.b16 %v1194
    %v1402 = vunpack.c.l.b16 %v1195
    %v1403 = vunpack.c.h.b16 %v1195
    %v1404 = vunpack.c.l.b16 %v1196
    %v1405 = vunpack.c.h.b16 %v1196
    %v1406 = vunpack.c.l.b16 %v1197
    %v1407 = vunpack.c.h.b16 %v1197
    %v1408 = vpack.c.b16 %v1288, %v1280
    %v1409 = vpack.c.b16 %v1289, %v1281
    %v1410 = vpack.c.b16 %v1290, %v1282
    %v1411 = vpack.c.b16 %v1291, %v1283
    %v1412 = vpack.c.b16 %v1292, %v1284
    %v1413 = vpack.c.b16 %v1293, %v1285
    %v1414 = vpack.c.b16 %v1294, %v1286
    %v1415 = vpack.c.b16 %v1295, %v1287
    %v1416 = vpack.c.b16 %v1304, %v1296
    %v1417 = vpack.c.b16 %v1305, %v1297
    %v1418 = vpack.c.b16 %v1306, %v1298
    %v1419 = vpack.c.b16 %v1307, %v1299
    %v1420 = vpack.c.b16 %v1308, %v1300
    %v1421 = vpack.c.b16 %v1309, %v1301
    %v1422 = vpack.c.b16 %v1310, %v1302
    %v1423 = vpack.c.b16 %v1311, %v1303
    %v1424 = vpack.c.b16 %v1320, %v1312
    %v1425 = vpack.c.b16 %v1321, %v1313
    %v1426 = vpack.c.b16 %v1322, %v1314
    %v1427 = vpack.c.b16 %v1323, %v1315
    %v1428 = vpack.c.b16 %v1324, %v1316
    %v1429 = vpack.c.b16 %v1325, %v1317
    %v1430 = vpack.c.b16 %v1326, %v1318
    %v1431 = vpack.c.b16 %v1327, %v1319
    %v1432 = vpack.c.b16 %v1336, %v1328
    %v1433 = vpack.c.b16 %v1337, %v1329
    %v1434 = vpack.c.b16 %v1338, %v1330
    %v1435 = vpack.c.b16 %v1339, %v1331
    %v1436 = vpack.c.b16 %v1340, %v1332
    %v1437 = vpack.c.b16 %v1341, %v1333
    %v1438 = vpack.c.b16 %v1342, %v1334
    %v1439 = vpack.c.b16 %v1343, %v1335
    %v1440 = vpack.c.b16 %v1352, %v1344
    %v1441 = vpack.c.b16 %v1353, %v1345
    %v1442 = vpack.c.b16 %v1354, %v1346
    %v1443 = vpack.c.b16 %v1355, %v1347
    %v1444 = vpack.c.b16 %v1356, %v1348
    %v1445 = vpack.c.b16 %v1357, %v1349
    %v1446 = vpack.c.b16 %v1358, %v1350
    %v1447 = vpack.c.b16 %v1359, %v1351
    %v1448 = vpack.c.b16 %v1368, %v1360
    %v1449 = vpack.c.b16 %v1369, %v1361
    %v1450 = vpack.c.b16 %v1370, %v1362
    %v1451 = vpack.c.b16 %v1371, %v1363
    %v1452 = vpack.c.b16 %v1372, %v1364
    %v1453 = vpack.c.b16 %v1373, %v1365
    %v1454 = vpack.c.b16 %v1374, %v1366
    %v1455 = vpack.c.b16 %v1375, %v1367
    %v1456 = vpack.c.b16 %v1384, %v1376
    %v1457 = vpack.c.b16 %v1385, %v1377
    %v1458 = vpack.c.b16 %v1386, %v1378
    %v1459 = vpack.c.b16 %v1387, %v1379
    %v1460 = vpack.c.b16 %v1388, %v1380
    %v1461 = vpack.c.b16 %v1389, %v1381
    %v1462 = vpack.c.b16 %v1390, %v1382
    %v1463 = vpack.c.b16 %v1391, %v1383
    %v1464 = vpack.c.b16 %v1400, %v1392
    %v1465 = vpack.c.b16 %v1401, %v1393
    %v1466 = vpack.c.b16 %v1402, %v1394
    %v1467 = vpack.c.b16 %v1403, %v1395
    %v1468 = vpack.c.b16 %v1404, %v1396
    %v1469 = vpack.c.b16 %v1405, %v1397
    %v1470 = vpack.c.b16 %v1406, %v1398
    %v1471 = vpack.c.b16 %v1407, %v1399
    %1536 = vmatpush.bf16.msra.mxu0 %v1464
    %1537 = vmatpush.bf16.msra.mxu0 %v1456
    %1538 = vmatpush.bf16.msra.mxu0 %v1448
    %1539 = vmatpush.bf16.msra.mxu0 %v1440
    %1540 = vmatpush.bf16.msra.mxu0 %v1432
    %1541 = vmatpush.bf16.msra.mxu0 %v1424
    %1542 = vmatpush.bf16.msra.mxu0 %v1416
    %1543 = vmatpush.bf16.msra.mxu0 %v1408
    %1544 = vmatmul.bf16.gmra.mxu0 %v1133
    %v1545 = vpop.f32.mrf.mxu0
    %v1546 = vadd.f32 %v1200, %v1545
    %v1547 = vpop.f32.mrf.mxu0
    %1548 = vdwg.mxu0
    %1549 = vmatpush.bf16.msra.mxu0 %v1465
    %1550 = vmatpush.bf16.msra.mxu0 %v1457
    %1551 = vmatpush.bf16.msra.mxu0 %v1449
    %1552 = vmatpush.bf16.msra.mxu0 %v1441
    %1553 = vmatpush.bf16.msra.mxu0 %v1433
    %1554 = vmatpush.bf16.msra.mxu0 %v1425
    %1555 = vmatpush.bf16.msra.mxu0 %v1417
    %1556 = vmatpush.bf16.msra.mxu0 %v1409
    %1557 = vmatmul.bf16.gmra.mxu0 %v1133
    %v1558 = vpop.f32.mrf.mxu0
    %v1559 = vadd.f32 %v1201, %v1558
    %v1560 = vpop.f32.mrf.mxu0
    %1561 = vdwg.mxu0
    %1562 = vmatpush.bf16.msra.mxu0 %v1466
    %1563 = vmatpush.bf16.msra.mxu0 %v1458
    %1564 = vmatpush.bf16.msra.mxu0 %v1450
    %1565 = vmatpush.bf16.msra.mxu0 %v1442
    %1566 = vmatpush.bf16.msra.mxu0 %v1434
    %1567 = vmatpush.bf16.msra.mxu0 %v1426
    %1568 = vmatpush.bf16.msra.mxu0 %v1418
    %1569 = vmatpush.bf16.msra.mxu0 %v1410
    %1570 = vmatmul.bf16.gmra.mxu0 %v1133
    %v1571 = vpop.f32.mrf.mxu0
    %v1572 = vadd.f32 %v1202, %v1571
    %v1573 = vpop.f32.mrf.mxu0
    %1574 = vdwg.mxu0
    %1575 = vmatpush.bf16.msra.mxu0 %v1467
    %1576 = vmatpush.bf16.msra.mxu0 %v1459
    %1577 = vmatpush.bf16.msra.mxu0 %v1451
    %1578 = vmatpush.bf16.msra.mxu0 %v1443
    %1579 = vmatpush.bf16.msra.mxu0 %v1435
    %1580 = vmatpush.bf16.msra.mxu0 %v1427
    %1581 = vmatpush.bf16.msra.mxu0 %v1419
    %1582 = vmatpush.bf16.msra.mxu0 %v1411
    %1583 = vmatmul.bf16.gmra.mxu0 %v1133
    %v1584 = vpop.f32.mrf.mxu0
    %v1585 = vadd.f32 %v1203, %v1584
    %v1586 = vpop.f32.mrf.mxu0
    %1587 = vdwg.mxu0
    %1588 = vmatpush.bf16.msra.mxu0 %v1468
    %1589 = vmatpush.bf16.msra.mxu0 %v1460
    %1590 = vmatpush.bf16.msra.mxu0 %v1452
    %1591 = vmatpush.bf16.msra.mxu0 %v1444
    %1592 = vmatpush.bf16.msra.mxu0 %v1436
    %1593 = vmatpush.bf16.msra.mxu0 %v1428
    %1594 = vmatpush.bf16.msra.mxu0 %v1420
    %1595 = vmatpush.bf16.msra.mxu0 %v1412
    %1596 = vmatmul.bf16.gmra.mxu0 %v1133
    %v1597 = vpop.f32.mrf.mxu0
    %v1598 = vadd.f32 %v1204, %v1597
    %v1599 = vpop.f32.mrf.mxu0
    %1600 = vdwg.mxu0
    %1601 = vmatpush.bf16.msra.mxu0 %v1469
    %1602 = vmatpush.bf16.msra.mxu0 %v1461
    %1603 = vmatpush.bf16.msra.mxu0 %v1453
    %1604 = vmatpush.bf16.msra.mxu0 %v1445
    %1605 = vmatpush.bf16.msra.mxu0 %v1437
    %1606 = vmatpush.bf16.msra.mxu0 %v1429
    %1607 = vmatpush.bf16.msra.mxu0 %v1421
    %1608 = vmatpush.bf16.msra.mxu0 %v1413
    %1609 = vmatmul.bf16.gmra.mxu0 %v1133
    %v1610 = vpop.f32.mrf.mxu0
    %v1611 = vadd.f32 %v1205, %v1610
    %v1612 = vpop.f32.mrf.mxu0
    %1613 = vdwg.mxu0
    %1614 = vmatpush.bf16.msra.mxu0 %v1470
    %1615 = vmatpush.bf16.msra.mxu0 %v1462
    %1616 = vmatpush.bf16.msra.mxu0 %v1454
    %1617 = vmatpush.bf16.msra.mxu0 %v1446
    %1618 = vmatpush.bf16.msra.mxu0 %v1438
    %1619 = vmatpush.bf16.msra.mxu0 %v1430
    %1620 = vmatpush.bf16.msra.mxu0 %v1422
    %1621 = vmatpush.bf16.msra.mxu0 %v1414
    %1622 = vmatmul.bf16.gmra.mxu0 %v1133
    %v1623 = vpop.f32.mrf.mxu0
    %v1624 = vadd.f32 %v1206, %v1623
    %v1625 = vpop.f32.mrf.mxu0
    %1626 = vdwg.mxu0
    %1627 = vmatpush.bf16.msra.mxu0 %v1471
    %1628 = vmatpush.bf16.msra.mxu0 %v1463
    %1629 = vmatpush.bf16.msra.mxu0 %v1455
    %1630 = vmatpush.bf16.msra.mxu0 %v1447
    %1631 = vmatpush.bf16.msra.mxu0 %v1439
    %1632 = vmatpush.bf16.msra.mxu0 %v1431
    %1633 = vmatpush.bf16.msra.mxu0 %v1423
    %1634 = vmatpush.bf16.msra.mxu0 %v1415
    %1635 = vmatmul.bf16.gmra.mxu0 %v1133
    %v1636 = vpop.f32.mrf.mxu0
    %v1637 = vadd.f32 %v1207, %v1636
    %v1638 = vpop.f32.mrf.mxu0
    %1639 = vdwg.mxu0
    %1640 = vst [vmem:[#allocation13] sm:$0xff] %v1546
    %1641 = vst [vmem:[#allocation13 + $0x8] sm:$0xff] %v1559
    %1642 = vst [vmem:[#allocation13 + $0x10] sm:$0xff] %v1572
    %1643 = vst [vmem:[#allocation13 + $0x18] sm:$0xff] %v1585
    %1644 = vst [vmem:[#allocation13 + $0x20] sm:$0xff] %v1598
    %1645 = vst [vmem:[#allocation13 + $0x28] sm:$0xff] %v1611
    %1646 = vst [vmem:[#allocation13 + $0x30] sm:$0xff] %v1624
    %1647 = vst [vmem:[#allocation13 + $0x38] sm:$0xff] %v1637
    %1648 = vst [vmem:[#allocation14] sm:$0xff] %v1020
    %1649 = vst [vmem:[#allocation14 + $0x8] sm:$0xff] %v1124
    // Predicated region
    $region50: #{tpu_custom_call.1} parent=1 // pred_check
      _
    $region51: #{tpu_custom_call.1} parent=1 // pred_check_branch
      %1651 = sbr.rel (0) target = $region53
    $region52: #{tpu_custom_call.1} parent=1 // pred_region
      %1653 = vsyncadd [#allocation4], 0
      %s1655 = sshll.u32 [#allocation13], 4
      %s1656 = int_to_ptr.vmem [resolvable:$true] %s1655
      %s1657 = sshll.u32 %s6, 4
      %s1658 = int_to_ptr.hbm [resolvable:$true] %s1657
      %1660 = dma.vmem_to_hbm [thread:$0]  %s1656, 1024, %s1658, [#allocation4]
    $region53: #{tpu_custom_call.1} parent=1 // pred_fallthru
      _
    // Predicated region
    $region54: #{tpu_custom_call.1} parent=1 // pred_check
      _
    $region55: #{tpu_custom_call.1} parent=1 // pred_check_branch
      %1662 = sbr.rel (0) target = $region57
    $region56: #{tpu_custom_call.1} parent=1 // pred_region
      %1664 = vsyncadd [#allocation15], 0
      %s1666 = sshll.u32 [#allocation14], 4
      %s1667 = int_to_ptr.vmem [resolvable:$true] %s1666
      %s1668 = sshll.u32 %s7, 4
      %s1669 = int_to_ptr.hbm [resolvable:$true] %s1668
      %1671 = dma.vmem_to_hbm [thread:$0]  %s1667, 256, %s1669, [#allocation15]
    $region57: #{tpu_custom_call.1} parent=1 // pred_fallthru
      _
    // Predicated region
    $region58: #{tpu_custom_call.1} parent=1 // pred_check
      _
    $region59: #{tpu_custom_call.1} parent=1 // pred_check_branch
      %1673 = sbr.rel (0) target = $region61
    $region60: #{tpu_custom_call.1} parent=1 // pred_region
      %1675 = dma.done [#allocation4], 1024
    $region61: #{tpu_custom_call.1} parent=1 // pred_fallthru
      _
    // Predicated region
    $region62: #{tpu_custom_call.1} parent=1 // pred_check
      _
    $region63: #{tpu_custom_call.1} parent=1 // pred_check_branch
      %1677 = sbr.rel (0) target = $region65
    $region64: #{tpu_custom_call.1} parent=1 // pred_region
      %1679 = dma.done [#allocation15], 256
    $region65: #{tpu_custom_call.1} parent=1 // pred_fallthru
      _
    %1680 = vsyncpa [#allocation3], 1
    %1681 = vsyncpa [#allocation6], 1
    %1682 = vsyncpa [#allocation9], 1
    %1683 = vsyncpa [#allocation12], 1
    %1684 = vsyncpa [#allocation4], 1
    %1685 = vsyncpa [#allocation15], 1

</llo_original>
